<compile_context>
chip_gen: v7x
topology: tpu7x:2x2x1
jax: 0.10.0
libtpu: 0.0.40
codegen_flags: <defaults>
</compile_context>

<pallas_src>
import functools

import jax
import jax.numpy as jnp
from jax.experimental import pallas as pl
from jax.experimental.pallas import tpu as pltpu

D_MODEL = 32
FFN_EXP = 4
LN_EPS = 1e-5


# ----------------------------- in-kernel math ------------------------------ #

def _gelu_tanh(x):
    # PyTorch GELU tanh approximation (|err| ~1e-3 vs erf form); tanh runs on
    # the otherwise-idle EUP slot.
    return 0.5 * x * (1.0 + jnp.tanh(0.7978845608028654
                                     * (x + 0.044715 * x * x * x)))


def _layernorm_cm(x, g, b):
    # Channel-major LayerNorm: x is (C, L); normalize over the channel axis
    # (== last dim of the PyTorch token-major layout).  g/b are (C, 1).
    mu = jnp.mean(x, axis=0, keepdims=True)
    xc = x - mu
    var = jnp.mean(xc * xc, axis=0, keepdims=True)
    return xc * jax.lax.rsqrt(var + LN_EPS) * g + b


def _attention_cm(q, k, v, bt, l_tok):
    """single_head_full_attention, channel-major, packed over `bt` batches.

    q/k/v are (d, bt*l_tok) f32 slabs (Q already pre-scaled by 1/sqrt(d) via
    the weight fold).  Scores are built K-major so the PV contraction is the
    natural (d,Lk)x(Lk,Lq) matmul and softmax normalization is deferred to a
    cheap (d,Lq) column scale.
    """
    outs = []
    for i in range(bt):
        lo, hi = i * l_tok, (i + 1) * l_tok
        qi = q[:, lo:hi].astype(jnp.bfloat16)           # (d, Lq)
        ki = k[:, lo:hi].astype(jnp.bfloat16)           # (d, Lk)
        vi = v[:, lo:hi].astype(jnp.bfloat16)           # (d, Lk)
        # sT[kk, qq] = k[:, kk] . q[:, qq]   -> (Lk, Lq), K-major
        sT = jax.lax.dot_general(ki, qi, (((0,), (0,)), ((), ())),
                                 preferred_element_type=jnp.float32)
        e = jnp.exp(sT - jnp.max(sT, axis=0, keepdims=True))   # (Lk, Lq) f32
        o = jax.lax.dot_general(vi, e.astype(jnp.bfloat16),
                                (((1,), (0,)), ((), ())),
                                preferred_element_type=jnp.float32)  # (d, Lq)
        denom = jnp.sum(e, axis=0, keepdims=True)               # (1, Lq)
        outs.append(o * pl.reciprocal(denom, approx=True))
    return outs[0] if bt == 1 else jnp.concatenate(outs, axis=1)


# --------------------------------- kernel ---------------------------------- #

def _fuse_block_kernel(f0_ref, f1_ref,
                       wqkv1_ref, g1_ref, b1_ref,
                       wqkv2_ref, g2_ref, b2_ref,
                       wf1_ref, wf2_ref, g3_ref, b3_ref,
                       out_ref, *, bt, l_tok):
    d = g1_ref.shape[0]

    x0b = f0_ref[0]                         # (d, Lp) bf16, channel-major
    x1b = f1_ref[0]                         # (d, Lp) bf16
    x0 = x0b.astype(jnp.float32)

    # ---- TransformerLayer #1: self-attention, no FFN ----
    # wqkv1 rows: [wq1/sqrt(d); wk1; wm1 @ wv1]  (merge folded into V)
    qkv = jnp.dot(wqkv1_ref[...], x0b,
                  preferred_element_type=jnp.float32)            # (3d, Lp)
    msg = _attention_cm(qkv[0:d], qkv[d:2 * d], qkv[2 * d:3 * d], bt, l_tok)
    msg = _layernorm_cm(msg, g1_ref[...], b1_ref[...])
    src = x0 + msg                                               # (d, Lp) f32
    src_b = src.astype(jnp.bfloat16)

    # ---- TransformerLayer #2: cross-attention + FFN ----
    # Block-diagonal fused projection on concat([src, x1]) (K = 2d fill):
    # rows [wq2/sqrt(d) | 0; 0 | wk2; 0 | wm2 @ wv2]
    cat2 = jnp.concatenate([src_b, x1b], axis=0)                 # (2d, Lp) bf16
    qkv2 = jnp.dot(wqkv2_ref[...], cat2,
                   preferred_element_type=jnp.float32)           # (3d, Lp)
    msg = _attention_cm(qkv2[0:d], qkv2[d:2 * d], qkv2[2 * d:3 * d], bt, l_tok)
    msg = _layernorm_cm(msg, g2_ref[...], b2_ref[...])

    # mlp(cat([src, msg], channel)) with the original (hid, 2d) first Linear;
    # concatenate the already-live bf16 slabs (no f32 temporary).
    catf = jnp.concatenate([src_b, msg.astype(jnp.bfloat16)], axis=0)  # (2d, Lp)
    h = jnp.dot(wf1_ref[...], catf, preferred_element_type=jnp.float32)
    h = _gelu_tanh(h)                                            # (hid, Lp) f32
    msg = jnp.dot(wf2_ref[...], h.astype(jnp.bfloat16),
                  preferred_element_type=jnp.float32)
    msg = _layernorm_cm(msg, g3_ref[...], b3_ref[...])

    out_ref[0] = (src + msg).astype(out_ref.dtype)


# ------------------------------ host wrapper ------------------------------- #

_WEIGHT_NAMES = ("wqkv1", "g1", "b1",
                 "wqkv2", "g2", "b2",
                 "wf1", "wf2", "g3", "b3")


def init_raw_params(key, d_model=D_MODEL, ffn_dim_expansion=FFN_EXP):
    """PyTorch-faithful raw weights (xavier_uniform, (out, in) orientation)."""
    hid = 2 * d_model * ffn_dim_expansion

    def xavier(k, fan_out, fan_in):
        bound = (6.0 / (fan_in + fan_out)) ** 0.5
        return jax.random.uniform(k, (fan_out, fan_in), jnp.float32,
                                  -bound, bound)

    ks = jax.random.split(key, 10)
    ones, zeros = jnp.ones((d_model,), jnp.float32), jnp.zeros((d_model,), jnp.float32)
    return {
        "wq1": xavier(ks[0], d_model, d_model),
        "wk1": xavier(ks[1], d_model, d_model),
        "wv1": xavier(ks[2], d_model, d_model),
        "wm1": xavier(ks[3], d_model, d_model),
        "ln1_g": ones, "ln1_b": zeros,
        "wq2": xavier(ks[4], d_model, d_model),
        "wk2": xavier(ks[5], d_model, d_model),
        "wv2": xavier(ks[6], d_model, d_model),
        "wm2": xavier(ks[7], d_model, d_model),
        "ln2_g": ones, "ln2_b": zeros,
        "wf1": xavier(ks[8], hid, 2 * d_model),
        "wf2": xavier(ks[9], d_model, hid),
        "ln3_g": ones, "ln3_b": zeros,
    }


def pack_params(raw):
    """Fold merge into V, 1/sqrt(d) into Q (f32 products), fuse projections,
    and cast MXU weights to bf16.  LayerNorm gamma/beta become (d, 1) f32."""
    d = raw["wq1"].shape[0]
    scale = 1.0 / (d ** 0.5)
    z = jnp.zeros((d, d), jnp.float32)
    bf = lambda x: x.astype(jnp.bfloat16)
    col = lambda v: v.reshape(-1, 1).astype(jnp.float32)

    wqkv1 = jnp.concatenate(
        [raw["wq1"] * scale, raw["wk1"], raw["wm1"] @ raw["wv1"]], axis=0)
    wqkv2 = jnp.concatenate([
        jnp.concatenate([raw["wq2"] * scale, z], axis=1),
        jnp.concatenate([z, raw["wk2"]], axis=1),
        jnp.concatenate([z, raw["wm2"] @ raw["wv2"]], axis=1),
    ], axis=0)

    return {
        "wqkv1": bf(wqkv1), "g1": col(raw["ln1_g"]), "b1": col(raw["ln1_b"]),
        "wqkv2": bf(wqkv2), "g2": col(raw["ln2_g"]), "b2": col(raw["ln2_b"]),
        "wf1": bf(raw["wf1"]), "wf2": bf(raw["wf2"]),
        "g3": col(raw["ln3_g"]), "b3": col(raw["ln3_b"]),
    }


def _pick_batch_pack(b, l_tok):
    """Pack Bt batches per grid step so the lane dim is >= 128 where possible."""
    if l_tok >= 128 or b <= 1:
        return 1
    target = -(-128 // l_tok)                 # cdiv(128, L)
    for cand in range(min(b, target), 0, -1):
        if b % cand == 0:
            return cand
    return 1


@functools.partial(jax.jit, static_argnames=("attn_type", "attn_num_splits"))
def feature_fuse_transformer(feature0, feature1, params,
                             attn_type="swin", attn_num_splits=1):
    assert attn_num_splits is None or attn_num_splits <= 1

    b, c, h, w = feature0.shape
    assert c == params["g1"].shape[0]
    L = h * w
    out_dtype = feature0.dtype

    bt = _pick_batch_pack(b, L)
    g = b // bt
    lp = bt * L

    # NCHW -> (B, C, L) is a free contiguous reshape; features are DMA'd bf16.
    f0 = feature0.reshape(b, c, L).astype(jnp.bfloat16)
    f1 = feature1.reshape(b, c, L).astype(jnp.bfloat16)
    if bt > 1:
        # Layout plumbing to present lane-dense (c, bt*L) slabs to the kernel.
        f0 = f0.reshape(g, bt, c, L).transpose(0, 2, 1, 3).reshape(g, c, lp)
        f1 = f1.reshape(g, bt, c, L).transpose(0, 2, 1, 3).reshape(g, c, lp)

    weights = [params[n] for n in _WEIGHT_NAMES]

    feat_spec = pl.BlockSpec((1, c, lp), lambda i: (i, 0, 0))
    weight_specs = [pl.BlockSpec(wgt.shape, lambda i: (0, 0)) for wgt in weights]

    fused = pl.pallas_call(
        functools.partial(_fuse_block_kernel, bt=bt, l_tok=L),
        out_shape=jax.ShapeDtypeStruct((g, c, lp), out_dtype),
        grid=(g,),
        in_specs=[feat_spec, feat_spec] + weight_specs,
        out_specs=pl.BlockSpec((1, c, lp), lambda i: (i, 0, 0)),
        compiler_params=pltpu.CompilerParams(
            dimension_semantics=("parallel",)),
    )(f0, f1, *weights)

    if bt > 1:
        fused = fused.reshape(g, c, bt, L).transpose(0, 2, 1, 3)
    return fused.reshape(b, c, h, w)


# ------------------------- pure-JAX reference (check) ----------------------- #

def _reference_forward(f0, f1, raw):
    """Token-major f32 mirror of the PyTorch forward using the raw weights."""
    b, c, h, w = f0.shape
    L = h * w
    d = c
    x0 = jnp.transpose(f0.reshape(b, c, L), (0, 2, 1))   # (B, L, C)
    x1 = jnp.transpose(f1.reshape(b, c, L), (0, 2, 1))

    def lin(x, wt):
        return jnp.einsum("blc,oc->blo", x, wt, precision="highest")

    def ln(x, gg, bb):
        mu = jnp.mean(x, -1, keepdims=True)
        var = jnp.mean((x - mu) ** 2, -1, keepdims=True)
        return (x - mu) * jax.lax.rsqrt(var + LN_EPS) * gg + bb

    def attn(q, k, v):
        s = jnp.einsum("bqc,bkc->bqk", q, k, precision="highest") / (d ** 0.5)
        return jnp.einsum("bqk,bkc->bqc", jax.nn.softmax(s, axis=-1), v,
                          precision="highest")

    # Layer 1: self-attention, no FFN
    m = attn(lin(x0, raw["wq1"]), lin(x0, raw["wk1"]), lin(x0, raw["wv1"]))
    m = ln(lin(m, raw["wm1"]), raw["ln1_g"], raw["ln1_b"])
    src = x0 + m

    # Layer 2: cross-attention + FFN
    m = attn(lin(src, raw["wq2"]), lin(x1, raw["wk2"]), lin(x1, raw["wv2"]))
    m = ln(lin(m, raw["wm2"]), raw["ln2_g"], raw["ln2_b"])
    hdn = _gelu_tanh(lin(jnp.concatenate([src, m], axis=-1), raw["wf1"]))
    m = ln(lin(hdn, raw["wf2"]), raw["ln3_g"], raw["ln3_b"])
    out = src + m
    return jnp.transpose(out, (0, 2, 1)).reshape(b, c, h, w)


# ----------------------------------- main ----------------------------------- #

if __name__ == "__main__":
    key = jax.random.PRNGKey(0)
    kp, kf = jax.random.split(key, 2)

    raw = init_raw_params(kp)
    params = pack_params(raw)

    b = 2
    # Two configs: L=64 exercises the Bt=2 lane-dense batch-packing path,
    # L=256 exercises the plain Bt=1 path.
    for hh, ww in ((8, 8), (16, 16)):
        k0 = jax.random.fold_in(kf, hh)
        k1 = jax.random.fold_in(kf, hh + 1)
        feature0 = jax.random.normal(k0, (b, D_MODEL, hh, ww), jnp.float32)
        feature1 = jax.random.normal(k1, (b, D_MODEL, hh, ww), jnp.float32)

        out = feature_fuse_transformer(feature0, feature1, params,
                                       attn_type="swin", attn_num_splits=1)
        out = jax.block_until_ready(out)

        assert out.shape == (b, D_MODEL, hh, ww), out.shape
        assert bool(jnp.all(jnp.isfinite(out)))

        ref = _reference_forward(feature0, feature1, raw)
        err = float(jnp.max(jnp.abs(out - ref)))
        assert err < 0.15, f"H=W={hh}: max |kernel - reference| = {err}"

    print("KERNEL_OK")
</pallas_src>

<mosaic_0001>
module attributes {stable_mosaic.version = 11 : i64} {
  func.func @_fuse_block_kernel(%arg0: i32, %arg1: memref<1x32x128xbf16, #tpu.memory_space<vmem>>, %arg2: memref<1x32x128xbf16, #tpu.memory_space<vmem>>, %arg3: memref<96x32xbf16, #tpu.memory_space<vmem>>, %arg4: memref<32x1xf32, #tpu.memory_space<vmem>>, %arg5: memref<32x1xf32, #tpu.memory_space<vmem>>, %arg6: memref<96x64xbf16, #tpu.memory_space<vmem>>, %arg7: memref<32x1xf32, #tpu.memory_space<vmem>>, %arg8: memref<32x1xf32, #tpu.memory_space<vmem>>, %arg9: memref<256x64xbf16, #tpu.memory_space<vmem>>, %arg10: memref<32x256xbf16, #tpu.memory_space<vmem>>, %arg11: memref<32x1xf32, #tpu.memory_space<vmem>>, %arg12: memref<32x1xf32, #tpu.memory_space<vmem>>, %arg13: memref<1x32x128xf32, #tpu.memory_space<vmem>>) attributes {dimension_semantics = [#tpu.dimension_semantics<parallel>], iteration_bounds = array<i64: 1>, scalar_prefetch = 0 : i64, scratch_operands = 0 : i64, tpu.core_type = #tpu.core_type<tc>, window_params = [{transform_indices = @transform_0, window_bounds = array<i64: 1, 32, 128>}, {transform_indices = @transform_1, window_bounds = array<i64: 1, 32, 128>}, {pipeline_mode = #tpu.pipeline_mode<synchronous>, transform_indices = @transform_2, window_bounds = array<i64: 96, 32>}, {pipeline_mode = #tpu.pipeline_mode<synchronous>, transform_indices = @transform_3, window_bounds = array<i64: 32, 1>}, {pipeline_mode = #tpu.pipeline_mode<synchronous>, transform_indices = @transform_4, window_bounds = array<i64: 32, 1>}, {pipeline_mode = #tpu.pipeline_mode<synchronous>, transform_indices = @transform_5, window_bounds = array<i64: 96, 64>}, {pipeline_mode = #tpu.pipeline_mode<synchronous>, transform_indices = @transform_6, window_bounds = array<i64: 32, 1>}, {pipeline_mode = #tpu.pipeline_mode<synchronous>, transform_indices = @transform_7, window_bounds = array<i64: 32, 1>}, {pipeline_mode = #tpu.pipeline_mode<synchronous>, transform_indices = @transform_8, window_bounds = array<i64: 256, 64>}, {pipeline_mode = #tpu.pipeline_mode<synchronous>, transform_indices = @transform_9, window_bounds = array<i64: 32, 256>}, {pipeline_mode = #tpu.pipeline_mode<synchronous>, transform_indices = @transform_10, window_bounds = array<i64: 32, 1>}, {pipeline_mode = #tpu.pipeline_mode<synchronous>, transform_indices = @transform_11, window_bounds = array<i64: 32, 1>}, {transform_indices = @transform_12, window_bounds = array<i64: 1, 32, 128>}]} {
    %c0 = arith.constant 0 : index
    %c0_0 = arith.constant 0 : index
    %c0_1 = arith.constant 0 : index
    %0 = vector.load %arg1[%c0, %c0_0, %c0_1] : memref<1x32x128xbf16, #tpu.memory_space<vmem>>, vector<1x32x128xbf16>
    %1 = vector.shape_cast %0 : vector<1x32x128xbf16> to vector<32x128xbf16>
    %c0_2 = arith.constant 0 : index
    %c0_3 = arith.constant 0 : index
    %c0_4 = arith.constant 0 : index
    %2 = vector.load %arg2[%c0_2, %c0_3, %c0_4] : memref<1x32x128xbf16, #tpu.memory_space<vmem>>, vector<1x32x128xbf16>
    %3 = vector.shape_cast %2 : vector<1x32x128xbf16> to vector<32x128xbf16>
    %4 = arith.extf %1 : vector<32x128xbf16> to vector<32x128xf32>
    %c0_5 = arith.constant 0 : index
    %c0_6 = arith.constant 0 : index
    %5 = vector.load %arg3[%c0_5, %c0_6] : memref<96x32xbf16, #tpu.memory_space<vmem>>, vector<96x32xbf16>
    %cst = arith.constant dense<0.000000e+00> : vector<96x128xf32>
    %6 = tpu.matmul %5, %1, %cst {dimension_numbers = #tpu.dot_dimension_numbers<[1], [0], [0], [1], [0, 0, 1, 1], [], []>} : vector<96x32xbf16>, vector<32x128xbf16>, vector<96x128xf32> -> vector<96x128xf32>
    %7 = vector.extract_strided_slice %6 {offsets = [0, 0], sizes = [32, 128], strides = [1, 1]} : vector<96x128xf32> to vector<32x128xf32>
    %8 = vector.extract_strided_slice %6 {offsets = [32, 0], sizes = [32, 128], strides = [1, 1]} : vector<96x128xf32> to vector<32x128xf32>
    %9 = vector.extract_strided_slice %6 {offsets = [64, 0], sizes = [32, 128], strides = [1, 1]} : vector<96x128xf32> to vector<32x128xf32>
    %10 = vector.extract_strided_slice %7 {offsets = [0, 0], sizes = [32, 64], strides = [1, 1]} : vector<32x128xf32> to vector<32x64xf32>
    %11 = arith.truncf %10 : vector<32x64xf32> to vector<32x64xbf16>
    %12 = vector.extract_strided_slice %8 {offsets = [0, 0], sizes = [32, 64], strides = [1, 1]} : vector<32x128xf32> to vector<32x64xf32>
    %13 = arith.truncf %12 : vector<32x64xf32> to vector<32x64xbf16>
    %14 = vector.extract_strided_slice %9 {offsets = [0, 0], sizes = [32, 64], strides = [1, 1]} : vector<32x128xf32> to vector<32x64xf32>
    %15 = arith.truncf %14 : vector<32x64xf32> to vector<32x64xbf16>
    %cst_7 = arith.constant dense<0.000000e+00> : vector<64x64xf32>
    %16 = tpu.matmul %13, %11, %cst_7 {dimension_numbers = #tpu.dot_dimension_numbers<[0], [0], [1], [1], [0, 1, 1, 1], [], []>} : vector<32x64xbf16>, vector<32x64xbf16>, vector<64x64xf32> -> vector<64x64xf32>
    %cst_8 = arith.constant dense<0xFF800000> : vector<64xf32>
    %17 = vector.multi_reduction <maximumf>, %16, %cst_8 [0] : vector<64x64xf32> to vector<64xf32>
    %18 = vector.shape_cast %17 : vector<64xf32> to vector<1x64xf32>
    %19 = vector.broadcast %18 : vector<1x64xf32> to vector<64x64xf32>
    %20 = arith.subf %16, %19 : vector<64x64xf32>
    %21 = math.exp %20 : vector<64x64xf32>
    %22 = arith.truncf %21 : vector<64x64xf32> to vector<64x64xbf16>
    %cst_9 = arith.constant dense<0.000000e+00> : vector<32x64xf32>
    %23 = tpu.matmul %15, %22, %cst_9 {dimension_numbers = #tpu.dot_dimension_numbers<[1], [0], [0], [1], [0, 0, 1, 1], [], []>} : vector<32x64xbf16>, vector<64x64xbf16>, vector<32x64xf32> -> vector<32x64xf32>
    %cst_10 = arith.constant dense<0.000000e+00> : vector<64xf32>
    %24 = vector.multi_reduction <add>, %21, %cst_10 [0] : vector<64x64xf32> to vector<64xf32>
    %25 = vector.shape_cast %24 : vector<64xf32> to vector<1x64xf32>
    %26 = tpu.reciprocal %25 {approx = true} : vector<1x64xf32> -> vector<1x64xf32>
    %27 = vector.broadcast %26 : vector<1x64xf32> to vector<32x64xf32>
    %28 = arith.mulf %23, %27 : vector<32x64xf32>
    %29 = vector.extract_strided_slice %7 {offsets = [0, 64], sizes = [32, 64], strides = [1, 1]} : vector<32x128xf32> to vector<32x64xf32>
    %30 = arith.truncf %29 : vector<32x64xf32> to vector<32x64xbf16>
    %31 = vector.extract_strided_slice %8 {offsets = [0, 64], sizes = [32, 64], strides = [1, 1]} : vector<32x128xf32> to vector<32x64xf32>
    %32 = arith.truncf %31 : vector<32x64xf32> to vector<32x64xbf16>
    %33 = vector.extract_strided_slice %9 {offsets = [0, 64], sizes = [32, 64], strides = [1, 1]} : vector<32x128xf32> to vector<32x64xf32>
    %34 = arith.truncf %33 : vector<32x64xf32> to vector<32x64xbf16>
    %cst_11 = arith.constant dense<0.000000e+00> : vector<64x64xf32>
    %35 = tpu.matmul %32, %30, %cst_11 {dimension_numbers = #tpu.dot_dimension_numbers<[0], [0], [1], [1], [0, 1, 1, 1], [], []>} : vector<32x64xbf16>, vector<32x64xbf16>, vector<64x64xf32> -> vector<64x64xf32>
    %cst_12 = arith.constant dense<0xFF800000> : vector<64xf32>
    %36 = vector.multi_reduction <maximumf>, %35, %cst_12 [0] : vector<64x64xf32> to vector<64xf32>
    %37 = vector.shape_cast %36 : vector<64xf32> to vector<1x64xf32>
    %38 = vector.broadcast %37 : vector<1x64xf32> to vector<64x64xf32>
    %39 = arith.subf %35, %38 : vector<64x64xf32>
    %40 = math.exp %39 : vector<64x64xf32>
    %41 = arith.truncf %40 : vector<64x64xf32> to vector<64x64xbf16>
    %cst_13 = arith.constant dense<0.000000e+00> : vector<32x64xf32>
    %42 = tpu.matmul %34, %41, %cst_13 {dimension_numbers = #tpu.dot_dimension_numbers<[1], [0], [0], [1], [0, 0, 1, 1], [], []>} : vector<32x64xbf16>, vector<64x64xbf16>, vector<32x64xf32> -> vector<32x64xf32>
    %cst_14 = arith.constant dense<0.000000e+00> : vector<64xf32>
    %43 = vector.multi_reduction <add>, %40, %cst_14 [0] : vector<64x64xf32> to vector<64xf32>
    %44 = vector.shape_cast %43 : vector<64xf32> to vector<1x64xf32>
    %45 = tpu.reciprocal %44 {approx = true} : vector<1x64xf32> -> vector<1x64xf32>
    %46 = vector.broadcast %45 : vector<1x64xf32> to vector<32x64xf32>
    %47 = arith.mulf %42, %46 : vector<32x64xf32>
    %48 = tpu.concatenate %28, %47 in 1 : vector<32x64xf32>, vector<32x64xf32> -> vector<32x128xf32>
    %c0_15 = arith.constant 0 : index
    %c0_16 = arith.constant 0 : index
    %49 = vector.load %arg4[%c0_15, %c0_16] : memref<32x1xf32, #tpu.memory_space<vmem>>, vector<32x1xf32>
    %c0_17 = arith.constant 0 : index
    %c0_18 = arith.constant 0 : index
    %50 = vector.load %arg5[%c0_17, %c0_18] : memref<32x1xf32, #tpu.memory_space<vmem>>, vector<32x1xf32>
    %cst_19 = arith.constant dense<0.000000e+00> : vector<128xf32>
    %51 = vector.multi_reduction <add>, %48, %cst_19 [0] : vector<32x128xf32> to vector<128xf32>
    %52 = vector.shape_cast %51 : vector<128xf32> to vector<1x128xf32>
    %cst_20 = arith.constant 3.200000e+01 : f32
    %53 = vector.broadcast %cst_20 : f32 to vector<1x128xf32>
    %54 = arith.divf %52, %53 : vector<1x128xf32>
    %55 = vector.broadcast %54 : vector<1x128xf32> to vector<32x128xf32>
    %56 = arith.subf %48, %55 : vector<32x128xf32>
    %57 = arith.mulf %56, %56 : vector<32x128xf32>
    %cst_21 = arith.constant dense<0.000000e+00> : vector<128xf32>
    %58 = vector.multi_reduction <add>, %57, %cst_21 [0] : vector<32x128xf32> to vector<128xf32>
    %59 = vector.shape_cast %58 : vector<128xf32> to vector<1x128xf32>
    %cst_22 = arith.constant 3.200000e+01 : f32
    %60 = vector.broadcast %cst_22 : f32 to vector<1x128xf32>
    %61 = arith.divf %59, %60 : vector<1x128xf32>
    %cst_23 = arith.constant 9.99999974E-6 : f32
    %62 = vector.broadcast %cst_23 : f32 to vector<1x128xf32>
    %63 = arith.addf %61, %62 : vector<1x128xf32>
    %64 = math.rsqrt %63 : vector<1x128xf32>
    %65 = vector.broadcast %64 : vector<1x128xf32> to vector<32x128xf32>
    %66 = arith.mulf %56, %65 : vector<32x128xf32>
    %67 = vector.broadcast %49 : vector<32x1xf32> to vector<32x128xf32>
    %68 = arith.mulf %66, %67 : vector<32x128xf32>
    %69 = vector.broadcast %50 : vector<32x1xf32> to vector<32x128xf32>
    %70 = arith.addf %68, %69 : vector<32x128xf32>
    %71 = arith.addf %4, %70 : vector<32x128xf32>
    %72 = arith.truncf %71 : vector<32x128xf32> to vector<32x128xbf16>
    %73 = tpu.concatenate %72, %3 in 0 : vector<32x128xbf16>, vector<32x128xbf16> -> vector<64x128xbf16>
    %c0_24 = arith.constant 0 : index
    %c0_25 = arith.constant 0 : index
    %74 = vector.load %arg6[%c0_24, %c0_25] : memref<96x64xbf16, #tpu.memory_space<vmem>>, vector<96x64xbf16>
    %cst_26 = arith.constant dense<0.000000e+00> : vector<96x128xf32>
    %75 = tpu.matmul %74, %73, %cst_26 {dimension_numbers = #tpu.dot_dimension_numbers<[1], [0], [0], [1], [0, 0, 1, 1], [], []>} : vector<96x64xbf16>, vector<64x128xbf16>, vector<96x128xf32> -> vector<96x128xf32>
    %76 = vector.extract_strided_slice %75 {offsets = [0, 0], sizes = [32, 128], strides = [1, 1]} : vector<96x128xf32> to vector<32x128xf32>
    %77 = vector.extract_strided_slice %75 {offsets = [32, 0], sizes = [32, 128], strides = [1, 1]} : vector<96x128xf32> to vector<32x128xf32>
    %78 = vector.extract_strided_slice %75 {offsets = [64, 0], sizes = [32, 128], strides = [1, 1]} : vector<96x128xf32> to vector<32x128xf32>
    %79 = vector.extract_strided_slice %76 {offsets = [0, 0], sizes = [32, 64], strides = [1, 1]} : vector<32x128xf32> to vector<32x64xf32>
    %80 = arith.truncf %79 : vector<32x64xf32> to vector<32x64xbf16>
    %81 = vector.extract_strided_slice %77 {offsets = [0, 0], sizes = [32, 64], strides = [1, 1]} : vector<32x128xf32> to vector<32x64xf32>
    %82 = arith.truncf %81 : vector<32x64xf32> to vector<32x64xbf16>
    %83 = vector.extract_strided_slice %78 {offsets = [0, 0], sizes = [32, 64], strides = [1, 1]} : vector<32x128xf32> to vector<32x64xf32>
    %84 = arith.truncf %83 : vector<32x64xf32> to vector<32x64xbf16>
    %cst_27 = arith.constant dense<0.000000e+00> : vector<64x64xf32>
    %85 = tpu.matmul %82, %80, %cst_27 {dimension_numbers = #tpu.dot_dimension_numbers<[0], [0], [1], [1], [0, 1, 1, 1], [], []>} : vector<32x64xbf16>, vector<32x64xbf16>, vector<64x64xf32> -> vector<64x64xf32>
    %cst_28 = arith.constant dense<0xFF800000> : vector<64xf32>
    %86 = vector.multi_reduction <maximumf>, %85, %cst_28 [0] : vector<64x64xf32> to vector<64xf32>
    %87 = vector.shape_cast %86 : vector<64xf32> to vector<1x64xf32>
    %88 = vector.broadcast %87 : vector<1x64xf32> to vector<64x64xf32>
    %89 = arith.subf %85, %88 : vector<64x64xf32>
    %90 = math.exp %89 : vector<64x64xf32>
    %91 = arith.truncf %90 : vector<64x64xf32> to vector<64x64xbf16>
    %cst_29 = arith.constant dense<0.000000e+00> : vector<32x64xf32>
    %92 = tpu.matmul %84, %91, %cst_29 {dimension_numbers = #tpu.dot_dimension_numbers<[1], [0], [0], [1], [0, 0, 1, 1], [], []>} : vector<32x64xbf16>, vector<64x64xbf16>, vector<32x64xf32> -> vector<32x64xf32>
    %cst_30 = arith.constant dense<0.000000e+00> : vector<64xf32>
    %93 = vector.multi_reduction <add>, %90, %cst_30 [0] : vector<64x64xf32> to vector<64xf32>
    %94 = vector.shape_cast %93 : vector<64xf32> to vector<1x64xf32>
    %95 = tpu.reciprocal %94 {approx = true} : vector<1x64xf32> -> vector<1x64xf32>
    %96 = vector.broadcast %95 : vector<1x64xf32> to vector<32x64xf32>
    %97 = arith.mulf %92, %96 : vector<32x64xf32>
    %98 = vector.extract_strided_slice %76 {offsets = [0, 64], sizes = [32, 64], strides = [1, 1]} : vector<32x128xf32> to vector<32x64xf32>
    %99 = arith.truncf %98 : vector<32x64xf32> to vector<32x64xbf16>
    %100 = vector.extract_strided_slice %77 {offsets = [0, 64], sizes = [32, 64], strides = [1, 1]} : vector<32x128xf32> to vector<32x64xf32>
    %101 = arith.truncf %100 : vector<32x64xf32> to vector<32x64xbf16>
    %102 = vector.extract_strided_slice %78 {offsets = [0, 64], sizes = [32, 64], strides = [1, 1]} : vector<32x128xf32> to vector<32x64xf32>
    %103 = arith.truncf %102 : vector<32x64xf32> to vector<32x64xbf16>
    %cst_31 = arith.constant dense<0.000000e+00> : vector<64x64xf32>
    %104 = tpu.matmul %101, %99, %cst_31 {dimension_numbers = #tpu.dot_dimension_numbers<[0], [0], [1], [1], [0, 1, 1, 1], [], []>} : vector<32x64xbf16>, vector<32x64xbf16>, vector<64x64xf32> -> vector<64x64xf32>
    %cst_32 = arith.constant dense<0xFF800000> : vector<64xf32>
    %105 = vector.multi_reduction <maximumf>, %104, %cst_32 [0] : vector<64x64xf32> to vector<64xf32>
    %106 = vector.shape_cast %105 : vector<64xf32> to vector<1x64xf32>
    %107 = vector.broadcast %106 : vector<1x64xf32> to vector<64x64xf32>
    %108 = arith.subf %104, %107 : vector<64x64xf32>
    %109 = math.exp %108 : vector<64x64xf32>
    %110 = arith.truncf %109 : vector<64x64xf32> to vector<64x64xbf16>
    %cst_33 = arith.constant dense<0.000000e+00> : vector<32x64xf32>
    %111 = tpu.matmul %103, %110, %cst_33 {dimension_numbers = #tpu.dot_dimension_numbers<[1], [0], [0], [1], [0, 0, 1, 1], [], []>} : vector<32x64xbf16>, vector<64x64xbf16>, vector<32x64xf32> -> vector<32x64xf32>
    %cst_34 = arith.constant dense<0.000000e+00> : vector<64xf32>
    %112 = vector.multi_reduction <add>, %109, %cst_34 [0] : vector<64x64xf32> to vector<64xf32>
    %113 = vector.shape_cast %112 : vector<64xf32> to vector<1x64xf32>
    %114 = tpu.reciprocal %113 {approx = true} : vector<1x64xf32> -> vector<1x64xf32>
    %115 = vector.broadcast %114 : vector<1x64xf32> to vector<32x64xf32>
    %116 = arith.mulf %111, %115 : vector<32x64xf32>
    %117 = tpu.concatenate %97, %116 in 1 : vector<32x64xf32>, vector<32x64xf32> -> vector<32x128xf32>
    %c0_35 = arith.constant 0 : index
    %c0_36 = arith.constant 0 : index
    %118 = vector.load %arg7[%c0_35, %c0_36] : memref<32x1xf32, #tpu.memory_space<vmem>>, vector<32x1xf32>
    %c0_37 = arith.constant 0 : index
    %c0_38 = arith.constant 0 : index
    %119 = vector.load %arg8[%c0_37, %c0_38] : memref<32x1xf32, #tpu.memory_space<vmem>>, vector<32x1xf32>
    %cst_39 = arith.constant dense<0.000000e+00> : vector<128xf32>
    %120 = vector.multi_reduction <add>, %117, %cst_39 [0] : vector<32x128xf32> to vector<128xf32>
    %121 = vector.shape_cast %120 : vector<128xf32> to vector<1x128xf32>
    %cst_40 = arith.constant 3.200000e+01 : f32
    %122 = vector.broadcast %cst_40 : f32 to vector<1x128xf32>
    %123 = arith.divf %121, %122 : vector<1x128xf32>
    %124 = vector.broadcast %123 : vector<1x128xf32> to vector<32x128xf32>
    %125 = arith.subf %117, %124 : vector<32x128xf32>
    %126 = arith.mulf %125, %125 : vector<32x128xf32>
    %cst_41 = arith.constant dense<0.000000e+00> : vector<128xf32>
    %127 = vector.multi_reduction <add>, %126, %cst_41 [0] : vector<32x128xf32> to vector<128xf32>
    %128 = vector.shape_cast %127 : vector<128xf32> to vector<1x128xf32>
    %cst_42 = arith.constant 3.200000e+01 : f32
    %129 = vector.broadcast %cst_42 : f32 to vector<1x128xf32>
    %130 = arith.divf %128, %129 : vector<1x128xf32>
    %cst_43 = arith.constant 9.99999974E-6 : f32
    %131 = vector.broadcast %cst_43 : f32 to vector<1x128xf32>
    %132 = arith.addf %130, %131 : vector<1x128xf32>
    %133 = math.rsqrt %132 : vector<1x128xf32>
    %134 = vector.broadcast %133 : vector<1x128xf32> to vector<32x128xf32>
    %135 = arith.mulf %125, %134 : vector<32x128xf32>
    %136 = vector.broadcast %118 : vector<32x1xf32> to vector<32x128xf32>
    %137 = arith.mulf %135, %136 : vector<32x128xf32>
    %138 = vector.broadcast %119 : vector<32x1xf32> to vector<32x128xf32>
    %139 = arith.addf %137, %138 : vector<32x128xf32>
    %140 = arith.truncf %139 : vector<32x128xf32> to vector<32x128xbf16>
    %141 = tpu.concatenate %72, %140 in 0 : vector<32x128xbf16>, vector<32x128xbf16> -> vector<64x128xbf16>
    %c0_44 = arith.constant 0 : index
    %c0_45 = arith.constant 0 : index
    %142 = vector.load %arg9[%c0_44, %c0_45] : memref<256x64xbf16, #tpu.memory_space<vmem>>, vector<256x64xbf16>
    %cst_46 = arith.constant dense<0.000000e+00> : vector<256x128xf32>
    %143 = tpu.matmul %142, %141, %cst_46 {dimension_numbers = #tpu.dot_dimension_numbers<[1], [0], [0], [1], [0, 0, 1, 1], [], []>} : vector<256x64xbf16>, vector<64x128xbf16>, vector<256x128xf32> -> vector<256x128xf32>
    %cst_47 = arith.constant 5.000000e-01 : f32
    %144 = vector.broadcast %cst_47 : f32 to vector<256x128xf32>
    %145 = arith.mulf %144, %143 : vector<256x128xf32>
    %cst_48 = arith.constant 4.471500e-02 : f32
    %146 = vector.broadcast %cst_48 : f32 to vector<256x128xf32>
    %147 = arith.mulf %146, %143 : vector<256x128xf32>
    %148 = arith.mulf %147, %143 : vector<256x128xf32>
    %149 = arith.mulf %148, %143 : vector<256x128xf32>
    %150 = arith.addf %143, %149 : vector<256x128xf32>
    %cst_49 = arith.constant 0.797884583 : f32
    %151 = vector.broadcast %cst_49 : f32 to vector<256x128xf32>
    %152 = arith.mulf %151, %150 : vector<256x128xf32>
    %153 = math.tanh %152 : vector<256x128xf32>
    %cst_50 = arith.constant 1.000000e+00 : f32
    %154 = vector.broadcast %cst_50 : f32 to vector<256x128xf32>
    %155 = arith.addf %154, %153 : vector<256x128xf32>
    %156 = arith.mulf %145, %155 : vector<256x128xf32>
    %c0_51 = arith.constant 0 : index
    %c0_52 = arith.constant 0 : index
    %157 = vector.load %arg10[%c0_51, %c0_52] : memref<32x256xbf16, #tpu.memory_space<vmem>>, vector<32x256xbf16>
    %158 = arith.truncf %156 : vector<256x128xf32> to vector<256x128xbf16>
    %cst_53 = arith.constant dense<0.000000e+00> : vector<32x128xf32>
    %159 = tpu.matmul %157, %158, %cst_53 {dimension_numbers = #tpu.dot_dimension_numbers<[1], [0], [0], [1], [0, 0, 1, 1], [], []>} : vector<32x256xbf16>, vector<256x128xbf16>, vector<32x128xf32> -> vector<32x128xf32>
    %c0_54 = arith.constant 0 : index
    %c0_55 = arith.constant 0 : index
    %160 = vector.load %arg11[%c0_54, %c0_55] : memref<32x1xf32, #tpu.memory_space<vmem>>, vector<32x1xf32>
    %c0_56 = arith.constant 0 : index
    %c0_57 = arith.constant 0 : index
    %161 = vector.load %arg12[%c0_56, %c0_57] : memref<32x1xf32, #tpu.memory_space<vmem>>, vector<32x1xf32>
    %cst_58 = arith.constant dense<0.000000e+00> : vector<128xf32>
    %162 = vector.multi_reduction <add>, %159, %cst_58 [0] : vector<32x128xf32> to vector<128xf32>
    %163 = vector.shape_cast %162 : vector<128xf32> to vector<1x128xf32>
    %cst_59 = arith.constant 3.200000e+01 : f32
    %164 = vector.broadcast %cst_59 : f32 to vector<1x128xf32>
    %165 = arith.divf %163, %164 : vector<1x128xf32>
    %166 = vector.broadcast %165 : vector<1x128xf32> to vector<32x128xf32>
    %167 = arith.subf %159, %166 : vector<32x128xf32>
    %168 = arith.mulf %167, %167 : vector<32x128xf32>
    %cst_60 = arith.constant dense<0.000000e+00> : vector<128xf32>
    %169 = vector.multi_reduction <add>, %168, %cst_60 [0] : vector<32x128xf32> to vector<128xf32>
    %170 = vector.shape_cast %169 : vector<128xf32> to vector<1x128xf32>
    %cst_61 = arith.constant 3.200000e+01 : f32
    %171 = vector.broadcast %cst_61 : f32 to vector<1x128xf32>
    %172 = arith.divf %170, %171 : vector<1x128xf32>
    %cst_62 = arith.constant 9.99999974E-6 : f32
    %173 = vector.broadcast %cst_62 : f32 to vector<1x128xf32>
    %174 = arith.addf %172, %173 : vector<1x128xf32>
    %175 = math.rsqrt %174 : vector<1x128xf32>
    %176 = vector.broadcast %175 : vector<1x128xf32> to vector<32x128xf32>
    %177 = arith.mulf %167, %176 : vector<32x128xf32>
    %178 = vector.broadcast %160 : vector<32x1xf32> to vector<32x128xf32>
    %179 = arith.mulf %177, %178 : vector<32x128xf32>
    %180 = vector.broadcast %161 : vector<32x1xf32> to vector<32x128xf32>
    %181 = arith.addf %179, %180 : vector<32x128xf32>
    %182 = arith.addf %71, %181 : vector<32x128xf32>
    %c0_63 = arith.constant 0 : index
    %c0_64 = arith.constant 0 : index
    %c0_65 = arith.constant 0 : index
    %183 = vector.load %arg13[%c0_63, %c0_64, %c0_65] : memref<1x32x128xf32, #tpu.memory_space<vmem>>, vector<1x32x128xf32>
    %184 = vector.shape_cast %183 : vector<1x32x128xf32> to vector<32x128xf32>
    %185 = vector.shape_cast %182 : vector<32x128xf32> to vector<1x32x128xf32>
    tpu.vector_store %arg13[%c0_63, %c0_64, %c0_65], %185 {strides = array<i32>} : memref<1x32x128xf32, #tpu.memory_space<vmem>>, vector<1x32x128xf32>,
    return
  }
  func.func @transform_0(%arg0: i32) -> (i32, i32, i32) {
    %c0_i32 = arith.constant 0 : i32
    %c0_i32_0 = arith.constant 0 : i32
    %c0_i32_1 = arith.constant 0 : i32
    return %arg0, %c0_i32, %c0_i32_0 : i32, i32, i32
  }
  func.func @transform_1(%arg0: i32) -> (i32, i32, i32) {
    %c0_i32 = arith.constant 0 : i32
    %c0_i32_0 = arith.constant 0 : i32
    %c0_i32_1 = arith.constant 0 : i32
    return %arg0, %c0_i32, %c0_i32_0 : i32, i32, i32
  }
  func.func @transform_2(%arg0: i32) -> (i32, i32) {
    %c0_i32 = arith.constant 0 : i32
    %c0_i32_0 = arith.constant 0 : i32
    %c0_i32_1 = arith.constant 0 : i32
    return %c0_i32, %c0_i32_0 : i32, i32
  }
  func.func @transform_3(%arg0: i32) -> (i32, i32) {
    %c0_i32 = arith.constant 0 : i32
    %c0_i32_0 = arith.constant 0 : i32
    %c0_i32_1 = arith.constant 0 : i32
    return %c0_i32, %c0_i32_0 : i32, i32
  }
  func.func @transform_4(%arg0: i32) -> (i32, i32) {
    %c0_i32 = arith.constant 0 : i32
    %c0_i32_0 = arith.constant 0 : i32
    %c0_i32_1 = arith.constant 0 : i32
    return %c0_i32, %c0_i32_0 : i32, i32
  }
  func.func @transform_5(%arg0: i32) -> (i32, i32) {
    %c0_i32 = arith.constant 0 : i32
    %c0_i32_0 = arith.constant 0 : i32
    %c0_i32_1 = arith.constant 0 : i32
    return %c0_i32, %c0_i32_0 : i32, i32
  }
  func.func @transform_6(%arg0: i32) -> (i32, i32) {
    %c0_i32 = arith.constant 0 : i32
    %c0_i32_0 = arith.constant 0 : i32
    %c0_i32_1 = arith.constant 0 : i32
    return %c0_i32, %c0_i32_0 : i32, i32
  }
  func.func @transform_7(%arg0: i32) -> (i32, i32) {
    %c0_i32 = arith.constant 0 : i32
    %c0_i32_0 = arith.constant 0 : i32
    %c0_i32_1 = arith.constant 0 : i32
    return %c0_i32, %c0_i32_0 : i32, i32
  }
  func.func @transform_8(%arg0: i32) -> (i32, i32) {
    %c0_i32 = arith.constant 0 : i32
    %c0_i32_0 = arith.constant 0 : i32
    %c0_i32_1 = arith.constant 0 : i32
    return %c0_i32, %c0_i32_0 : i32, i32
  }
  func.func @transform_9(%arg0: i32) -> (i32, i32) {
    %c0_i32 = arith.constant 0 : i32
    %c0_i32_0 = arith.constant 0 : i32
    %c0_i32_1 = arith.constant 0 : i32
    return %c0_i32, %c0_i32_0 : i32, i32
  }
  func.func @transform_10(%arg0: i32) -> (i32, i32) {
    %c0_i32 = arith.constant 0 : i32
    %c0_i32_0 = arith.constant 0 : i32
    %c0_i32_1 = arith.constant 0 : i32
    return %c0_i32, %c0_i32_0 : i32, i32
  }
  func.func @transform_11(%arg0: i32) -> (i32, i32) {
    %c0_i32 = arith.constant 0 : i32
    %c0_i32_0 = arith.constant 0 : i32
    %c0_i32_1 = arith.constant 0 : i32
    return %c0_i32, %c0_i32_0 : i32, i32
  }
  func.func @transform_12(%arg0: i32) -> (i32, i32, i32) {
    %c0_i32 = arith.constant 0 : i32
    %c0_i32_0 = arith.constant 0 : i32
    %c0_i32_1 = arith.constant 0 : i32
    return %arg0, %c0_i32, %c0_i32_0 : i32, i32, i32
  }
}

</mosaic_0001>

<llo_original>
// kernel: feature_fuse_transformer.1
$region0: #{feature_fuse_transformer.1}
  #allocation0 [shape = 'u32[]', space=smem, size = 0x4, offset = 0x4, fixed_abs, tag = 'smem constant byte address 0x4 - core index']
  #allocation1 [shape = 'u32[144,128]{1,0:T(1,128)}', space=vmem, size = 0x12000, scoped, tag = 'internal scratch']
  %s0 = inlined_call_operand.vmem [shape: bf16[1,32,128], index: 0, kind: input, shape index: {}]
  %s1 = inlined_call_operand.vmem [shape: bf16[1,32,128], index: 1, kind: input, shape index: {}]
  %s2 = inlined_call_operand.vmem [shape: bf16[96,32], index: 2, kind: input, shape index: {}]
  %s3 = inlined_call_operand.vmem [shape: f32[32,1], index: 3, kind: input, shape index: {}]
  %s4 = inlined_call_operand.vmem [shape: f32[32,1], index: 4, kind: input, shape index: {}]
  %s5 = inlined_call_operand.vmem [shape: bf16[96,64], index: 5, kind: input, shape index: {}]
  %s6 = inlined_call_operand.vmem [shape: f32[32,1], index: 6, kind: input, shape index: {}]
  %s7 = inlined_call_operand.vmem [shape: f32[32,1], index: 7, kind: input, shape index: {}]
  %s8 = inlined_call_operand.vmem [shape: bf16[256,64], index: 8, kind: input, shape index: {}]
  %s9 = inlined_call_operand.vmem [shape: bf16[32,256], index: 9, kind: input, shape index: {}]
  %s10 = inlined_call_operand.vmem [shape: f32[32,1], index: 10, kind: input, shape index: {}]
  %s11 = inlined_call_operand.vmem [shape: f32[32,1], index: 11, kind: input, shape index: {}]
  %s12 = inlined_call_operand.vmem [shape: f32[1,32,128], index: 12, kind: output, shape index: {}]
  %s13 = sld [smem:[#allocation0]]
  $region58: #{feature_fuse_transformer.1} parent=0
    _
  %s15 = ssub.s32 1, %s13
  %s16 = scalar_select 0, %s15, %s13
  // Predicated region
  $region2: #{feature_fuse_transformer.1} parent=0 // pred_check
    _
  $region3: #{feature_fuse_transformer.1} parent=0 // pred_check_branch
    %18 = sbr.rel (0) target = $region5
  $region4: #{feature_fuse_transformer.1} parent=0 // pred_region
    _
  $region5: #{feature_fuse_transformer.1} parent=0 // pred_fallthru
    _
  // Predicated region
  $region6: #{feature_fuse_transformer.1} parent=0 // pred_check
    _
  $region7: #{feature_fuse_transformer.1} parent=0 // pred_check_branch
    %20 = sbr.rel (0) target = $region9
  $region8: #{feature_fuse_transformer.1} parent=0 // pred_region
    _
  $region9: #{feature_fuse_transformer.1} parent=0 // pred_fallthru
    _
  // Predicated region
  $region10: #{feature_fuse_transformer.1} parent=0 // pred_check
    _
  $region11: #{feature_fuse_transformer.1} parent=0 // pred_check_branch
    %22 = sbr.rel (0) target = $region13
  $region12: #{feature_fuse_transformer.1} parent=0 // pred_region
    _
  $region13: #{feature_fuse_transformer.1} parent=0 // pred_fallthru
    _
  // Predicated region
  $region14: #{feature_fuse_transformer.1} parent=0 // pred_check
    _
  $region15: #{feature_fuse_transformer.1} parent=0 // pred_check_branch
    %24 = sbr.rel (0) target = $region17
  $region16: #{feature_fuse_transformer.1} parent=0 // pred_region
    _
  $region17: #{feature_fuse_transformer.1} parent=0 // pred_fallthru
    _
  // Predicated region
  $region18: #{feature_fuse_transformer.1} parent=0 // pred_check
    _
  $region19: #{feature_fuse_transformer.1} parent=0 // pred_check_branch
    %26 = sbr.rel (0) target = $region21
  $region20: #{feature_fuse_transformer.1} parent=0 // pred_region
    _
  $region21: #{feature_fuse_transformer.1} parent=0 // pred_fallthru
    _
  // Predicated region
  $region22: #{feature_fuse_transformer.1} parent=0 // pred_check
    _
  $region23: #{feature_fuse_transformer.1} parent=0 // pred_check_branch
    %28 = sbr.rel (0) target = $region25
  $region24: #{feature_fuse_transformer.1} parent=0 // pred_region
    _
  $region25: #{feature_fuse_transformer.1} parent=0 // pred_fallthru
    _
  // Predicated region
  $region26: #{feature_fuse_transformer.1} parent=0 // pred_check
    _
  $region27: #{feature_fuse_transformer.1} parent=0 // pred_check_branch
    %30 = sbr.rel (0) target = $region29
  $region28: #{feature_fuse_transformer.1} parent=0 // pred_region
    _
  $region29: #{feature_fuse_transformer.1} parent=0 // pred_fallthru
    _
  // Predicated region
  $region30: #{feature_fuse_transformer.1} parent=0 // pred_check
    _
  $region31: #{feature_fuse_transformer.1} parent=0 // pred_check_branch
    %32 = sbr.rel (0) target = $region33
  $region32: #{feature_fuse_transformer.1} parent=0 // pred_region
    _
  $region33: #{feature_fuse_transformer.1} parent=0 // pred_fallthru
    _
  // Predicated region
  $region34: #{feature_fuse_transformer.1} parent=0 // pred_check
    _
  $region35: #{feature_fuse_transformer.1} parent=0 // pred_check_branch
    %34 = sbr.rel (0) target = $region37
  $region36: #{feature_fuse_transformer.1} parent=0 // pred_region
    _
  $region37: #{feature_fuse_transformer.1} parent=0 // pred_fallthru
    _
  // Predicated region
  $region38: #{feature_fuse_transformer.1} parent=0 // pred_check
    _
  $region39: #{feature_fuse_transformer.1} parent=0 // pred_check_branch
    %36 = sbr.rel (0) target = $region41
  $region40: #{feature_fuse_transformer.1} parent=0 // pred_region
    _
  $region41: #{feature_fuse_transformer.1} parent=0 // pred_fallthru
    _
  // Predicated region
  $region42: #{feature_fuse_transformer.1} parent=0 // pred_check
    _
  $region43: #{feature_fuse_transformer.1} parent=0 // pred_check_branch
    %38 = sbr.rel (0) target = $region45
  $region44: #{feature_fuse_transformer.1} parent=0 // pred_region
    _
  $region45: #{feature_fuse_transformer.1} parent=0 // pred_fallthru
    _
  // Predicated region
  $region46: #{feature_fuse_transformer.1} parent=0 // pred_check
    _
  $region47: #{feature_fuse_transformer.1} parent=0 // pred_check_branch
    %40 = sbr.rel (0) target = $region49
  $region48: #{feature_fuse_transformer.1} parent=0 // pred_region
    _
  $region49: #{feature_fuse_transformer.1} parent=0 // pred_fallthru
    _
  %v42 = vld [vmem:[%s0] sm:$0xf]
  %v43 = vld [vmem:[%s0 + $0x4] sm:$0xf]
  %v44 = vld [vmem:[%s0 + $0x8] sm:$0xf]
  %v45 = vld [vmem:[%s0 + $0xc] sm:$0xf]
  %v46 = vld [vmem:[%s1] sm:$0xf]
  %v47 = vld [vmem:[%s1 + $0x4] sm:$0xf]
  %v48 = vld [vmem:[%s1 + $0x8] sm:$0xf]
  %v49 = vld [vmem:[%s1 + $0xc] sm:$0xf]
  %v50 = vunpack.c.l.bf16 %v42
  %v51 = vunpack.c.l.bf16 %v43
  %v52 = vunpack.c.l.bf16 %v44
  %v53 = vunpack.c.l.bf16 %v45
  %v54 = vld [vmem:[%s2] sm:$0xf]
  %v55 = vld [vmem:[%s2 + $0x4] sm:$0xf]
  %v56 = vld [vmem:[%s2 + $0x8] sm:$0xf]
  %v57 = vld [vmem:[%s2 + $0xc] sm:$0xf]
  %v58 = vld [vmem:[%s2 + $0x10] sm:$0xf]
  %v59 = vld [vmem:[%s2 + $0x14] sm:$0xf]
  %v60 = vld [vmem:[%s2 + $0x18] sm:$0xf]
  %v61 = vld [vmem:[%s2 + $0x1c] sm:$0xf]
  %v62 = vld [vmem:[%s2 + $0x20] sm:$0xf]
  %v63 = vld [vmem:[%s2 + $0x24] sm:$0xf]
  %v64 = vld [vmem:[%s2 + $0x28] sm:$0xf]
  %v65 = vld [vmem:[%s2 + $0x2c] sm:$0xf]
  %v78 = vunpack.c.l.b16 %v54
  %v79 = vunpack.c.l.b16 %v55
  %v80 = vunpack.c.l.b16 %v56
  %v81 = vunpack.c.l.b16 %v57
  %v82 = vunpack.c.l.b16 %v58
  %v83 = vunpack.c.l.b16 %v59
  %v84 = vunpack.c.l.b16 %v60
  %v85 = vunpack.c.l.b16 %v61
  %v86 = vunpack.c.l.b16 %v62
  %v87 = vunpack.c.l.b16 %v63
  %v88 = vunpack.c.l.b16 %v64
  %v89 = vunpack.c.l.b16 %v65
  %v90 = vpack.c.b16 %v79, %v78
  %v91 = vpack.c.b16 %v81, %v80
  %v92 = vpack.c.b16 %v83, %v82
  %v93 = vpack.c.b16 %v85, %v84
  %v94 = vpack.c.b16 %v87, %v86
  %v95 = vpack.c.b16 %v89, %v88
  %v100 = vunpack.c.l.b16 %v42
  %v101 = vunpack.c.l.b16 %v43
  %v102 = vunpack.c.l.b16 %v44
  %v103 = vunpack.c.l.b16 %v45
  %v104 = vpack.c.b16 %v101, %v100
  %v105 = vpack.c.b16 %v103, %v102
  %vm108 = vcmask 261120
  %v110 = vsel %vm108, %v90, 0
  %v113 = vsel %vm108, %v91, 0
  %v116 = vsel %vm108, %v92, 0
  %v119 = vsel %vm108, %v93, 0
  %v122 = vsel %vm108, %v94, 0
  %v125 = vsel %vm108, %v95, 0
  %127 = vmatprep.subr.bf16.mxu0 0
  %128 = vmatpush1.bf16.msra.mxu0 %v104
  %129 = vmatprep.subr.bf16.mxu0 0
  %130 = vmatpush1.bf16.msra.mxu0 %v105
  %131 = vmatprep.subr.bf16.mxu0 0
  %132 = vmatpush1.bf16.msra.mxu0 0
  %133 = vmatprep.subr.bf16.mxu0 0
  %134 = vmatpush1.bf16.msra.mxu0 0
  %135 = vmatprep.subr.bf16.mxu0 0
  %136 = vmatpush1.bf16.msra.mxu0 0
  %137 = vmatprep.subr.bf16.mxu0 0
  %138 = vmatpush1.bf16.msra.mxu0 0
  %139 = vmatprep.subr.bf16.mxu0 0
  %140 = vmatpush1.bf16.msra.mxu0 0
  %141 = vmatprep.subr.bf16.mxu0 0
  %142 = vmatpush1.bf16.msra.mxu0 0
  %143 = vmatprep.subr.bf16.mxu0 0
  %144 = vmatpush1.bf16.msra.mxu0 0
  %145 = vmatprep.subr.bf16.mxu0 0
  %146 = vmatpush1.bf16.msra.mxu0 0
  %147 = vmatprep.subr.bf16.mxu0 0
  %148 = vmatpush1.bf16.msra.mxu0 0
  %149 = vmatprep.subr.bf16.mxu0 0
  %150 = vmatpush1.bf16.msra.mxu0 0
  %151 = vmatprep.subr.bf16.mxu0 0
  %152 = vmatpush1.bf16.msra.mxu0 0
  %153 = vmatprep.subr.bf16.mxu0 0
  %154 = vmatpush1.bf16.msra.mxu0 0
  %155 = vmatprep.subr.bf16.mxu0 0
  %156 = vmatpush1.bf16.msra.mxu0 0
  %157 = vmatprep.subr.bf16.mxu0 0
  %158 = vmatpush1.bf16.msra.mxu0 0
  %159 = vmatprep.mubr.bf16.mxu0 0
  %160 = vmatmul.mubr.bf16.gmra.mrb[0].mxu0 %v110
  %v161 = vpop.f32.mrb[0].mxu0
  %v162 = vadd.f32 0.0, %v161
  %v163 = vpop.f32.mrb[0].mxu0
  %v164 = vpop.f32.mrb[0].mxu0
  %v165 = vadd.f32 0.0, %v164
  %v166 = vpop.f32.mrb[0].mxu0
  %167 = vmatprep.mubr.bf16.mxu0 0
  %168 = vmatmul.mubr.bf16.gmra.mrb[0].mxu0 %v113
  %v169 = vpop.f32.mrb[0].mxu0
  %v170 = vadd.f32 0.0, %v169
  %v171 = vpop.f32.mrb[0].mxu0
  %v172 = vpop.f32.mrb[0].mxu0
  %v173 = vadd.f32 0.0, %v172
  %v174 = vpop.f32.mrb[0].mxu0
  %175 = vmatprep.mubr.bf16.mxu0 0
  %176 = vmatmul.mubr.bf16.gmra.mrb[0].mxu0 %v116
  %v177 = vpop.f32.mrb[0].mxu0
  %v178 = vadd.f32 0.0, %v177
  %v179 = vpop.f32.mrb[0].mxu0
  %v180 = vpop.f32.mrb[0].mxu0
  %v181 = vadd.f32 0.0, %v180
  %v182 = vpop.f32.mrb[0].mxu0
  %183 = vmatprep.mubr.bf16.mxu0 0
  %184 = vmatmul.mubr.bf16.gmra.mrb[0].mxu0 %v119
  %v185 = vpop.f32.mrb[0].mxu0
  %v186 = vadd.f32 0.0, %v185
  %v187 = vpop.f32.mrb[0].mxu0
  %v188 = vpop.f32.mrb[0].mxu0
  %v189 = vadd.f32 0.0, %v188
  %v190 = vpop.f32.mrb[0].mxu0
  %191 = vmatprep.mubr.bf16.mxu0 0
  %192 = vmatmul.mubr.bf16.gmra.mrb[0].mxu0 %v122
  %v193 = vpop.f32.mrb[0].mxu0
  %v194 = vadd.f32 0.0, %v193
  %v195 = vpop.f32.mrb[0].mxu0
  %v196 = vpop.f32.mrb[0].mxu0
  %v197 = vadd.f32 0.0, %v196
  %v198 = vpop.f32.mrb[0].mxu0
  %199 = vmatprep.mubr.bf16.mxu0 0
  %200 = vmatmul.mubr.bf16.gmra.mrb[0].mxu0 %v125
  %v201 = vpop.f32.mrb[0].mxu0
  %v202 = vadd.f32 0.0, %v201
  %v203 = vpop.f32.mrb[0].mxu0
  %v204 = vpop.f32.mrb[0].mxu0
  %v205 = vadd.f32 0.0, %v204
  %v206 = vpop.f32.mrb[0].mxu0
  %207 = vdwg.mxu0
  %v208 = vpack.c.bf16 %v165, %v162
  %v209 = vpack.c.bf16 %v173, %v170
  %v210 = vpack.c.bf16 %v181, %v178
  %v211 = vpack.c.bf16 %v189, %v186
  %v212 = vpack.c.bf16 %v197, %v194
  %v213 = vpack.c.bf16 %v205, %v202
  %214 = vxpose.xlu0.c.b16.start [1/8] %v210, 128
  %215 = vxpose.xlu0.c.b16.cont [2/8] %v211, 128
  %216 = vxpose.xlu0.c.b16.cont [3/8] 0, 128
  %217 = vxpose.xlu0.c.b16.cont [4/8] 0, 128
  %218 = vxpose.xlu0.c.b16.cont [5/8] 0, 128
  %219 = vxpose.xlu0.c.b16.cont [6/8] 0, 128
  %220 = vxpose.xlu0.c.b16.cont [7/8] 0, 128
  %221 = vxpose.xlu0.c.b16.end [8/8] 0, 128
  %v222 = vpop.trf.xlu0
  %v223 = vpop.trf.xlu0
  %v224 = vpop.trf.xlu0
  %v225 = vpop.trf.xlu0
  %v226 = vpop.trf.xlu0
  %v227 = vpop.trf.xlu0
  %v228 = vpop.trf.xlu0
  %v229 = vpop.trf.xlu0
  %v231 = vsel %vm108, %v222, 0
  %v234 = vsel %vm108, %v223, 0
  %v237 = vsel %vm108, %v224, 0
  %v240 = vsel %vm108, %v225, 0
  %242 = vmatprep.subr.bf16.mxu0 0
  %243 = vmatpush1.bf16.msra.mxu0 %v208
  %244 = vmatprep.subr.bf16.mxu0 0
  %245 = vmatpush1.bf16.msra.mxu0 %v209
  %246 = vmatprep.subr.bf16.mxu0 0
  %247 = vmatpush1.bf16.msra.mxu0 0
  %248 = vmatprep.subr.bf16.mxu0 0
  %249 = vmatpush1.bf16.msra.mxu0 0
  %250 = vmatprep.subr.bf16.mxu0 0
  %251 = vmatpush1.bf16.msra.mxu0 0
  %252 = vmatprep.subr.bf16.mxu0 0
  %253 = vmatpush1.bf16.msra.mxu0 0
  %254 = vmatprep.subr.bf16.mxu0 0
  %255 = vmatpush1.bf16.msra.mxu0 0
  %256 = vmatprep.subr.bf16.mxu0 0
  %257 = vmatpush1.bf16.msra.mxu0 0
  %258 = vmatprep.subr.bf16.mxu0 0
  %259 = vmatpush1.bf16.msra.mxu0 0
  %260 = vmatprep.subr.bf16.mxu0 0
  %261 = vmatpush1.bf16.msra.mxu0 0
  %262 = vmatprep.subr.bf16.mxu0 0
  %263 = vmatpush1.bf16.msra.mxu0 0
  %264 = vmatprep.subr.bf16.mxu0 0
  %265 = vmatpush1.bf16.msra.mxu0 0
  %266 = vmatprep.subr.bf16.mxu0 0
  %267 = vmatpush1.bf16.msra.mxu0 0
  %268 = vmatprep.subr.bf16.mxu0 0
  %269 = vmatpush1.bf16.msra.mxu0 0
  %270 = vmatprep.subr.bf16.mxu0 0
  %271 = vmatpush1.bf16.msra.mxu0 0
  %272 = vmatprep.subr.bf16.mxu0 0
  %273 = vmatpush1.bf16.msra.mxu0 0
  %274 = vmatprep.mubr.bf16.mxu0 0
  %275 = vmatmul.mubr.bf16.gmra.mrb[0].mxu0 %v231
  %v276 = vpop.f32.mrb[0].mxu0
  %v277 = vadd.f32 0.0, %v276
  %v278 = vpop.f32.mrb[0].mxu0
  %v279 = vpop.f32.mrb[0].mxu0
  %v280 = vadd.f32 0.0, %v279
  %v281 = vpop.f32.mrb[0].mxu0
  %282 = vmatprep.mubr.bf16.mxu0 0
  %283 = vmatmul.mubr.bf16.gmra.mrb[0].mxu0 %v234
  %v284 = vpop.f32.mrb[0].mxu0
  %v285 = vadd.f32 0.0, %v284
  %v286 = vpop.f32.mrb[0].mxu0
  %v287 = vpop.f32.mrb[0].mxu0
  %v288 = vadd.f32 0.0, %v287
  %v289 = vpop.f32.mrb[0].mxu0
  %290 = vmatprep.mubr.bf16.mxu0 0
  %291 = vmatmul.mubr.bf16.gmra.mrb[0].mxu0 %v237
  %v292 = vpop.f32.mrb[0].mxu0
  %v293 = vadd.f32 0.0, %v292
  %v294 = vpop.f32.mrb[0].mxu0
  %v295 = vpop.f32.mrb[0].mxu0
  %v296 = vadd.f32 0.0, %v295
  %v297 = vpop.f32.mrb[0].mxu0
  %298 = vmatprep.mubr.bf16.mxu0 0
  %299 = vmatmul.mubr.bf16.gmra.mrb[0].mxu0 %v240
  %v300 = vpop.f32.mrb[0].mxu0
  %v301 = vadd.f32 0.0, %v300
  %v302 = vpop.f32.mrb[0].mxu0
  %v303 = vpop.f32.mrb[0].mxu0
  %v304 = vadd.f32 0.0, %v303
  %v305 = vpop.f32.mrb[0].mxu0
  %306 = vdwg.mxu0
  %vm307 = vcmask 523264
  %v308 = vsel %vm307, %v277, -inf
  %v309 = vsel %vm307, %v280, -inf
  %v310 = vsel %vm307, %v285, -inf
  %v311 = vsel %vm307, %v288, -inf
  %v312 = vsel %vm307, %v293, -inf
  %v313 = vmax.f32 %v308, %v312
  %v314 = vsel %vm307, %v296, -inf
  %v315 = vmax.f32 %v309, %v314
  %v316 = vsel %vm307, %v301, -inf
  %v317 = vmax.f32 %v310, %v316
  %v318 = vsel %vm307, %v304, -inf
  %v319 = vmax.f32 %v311, %v318
  %v320 = vmax.f32 %v313, %v315
  %v321 = vmax.f32 %v317, %v319
  %v322 = vmax.f32 %v320, %v321
  %v323 = vrot.slane %v322, 4
  %v324 = vmax.f32 %v322, %v323
  %v325 = vrot.slane %v324, 2
  %v326 = vmax.f32 %v324, %v325
  %v327 = vrot.slane %v326, 1
  %v328 = vmax.f32 %v326, %v327
  %v329 = vsub.f32 %v277, %v328
  %v330 = vsub.f32 %v280, %v328
  %v331 = vsub.f32 %v285, %v328
  %v332 = vsub.f32 %v288, %v328
  %v333 = vsub.f32 %v293, %v328
  %v334 = vsub.f32 %v296, %v328
  %v335 = vsub.f32 %v301, %v328
  %v336 = vsub.f32 %v304, %v328
  %v337 = vmul.f32 %v329, 1.442695
  %v338 = vpow.pop %v337
  %v339 = vmul.f32 %v330, 1.442695
  %v340 = vpow.pop %v339
  %v341 = vmul.f32 %v331, 1.442695
  %v342 = vpow.pop %v341
  %v343 = vmul.f32 %v332, 1.442695
  %v344 = vpow.pop %v343
  %v345 = vmul.f32 %v333, 1.442695
  %v346 = vpow.pop %v345
  %v347 = vmul.f32 %v334, 1.442695
  %v348 = vpow.pop %v347
  %v349 = vmul.f32 %v335, 1.442695
  %v350 = vpow.pop %v349
  %v351 = vmul.f32 %v336, 1.442695
  %v352 = vpow.pop %v351
  %v353 = vpack.c.bf16 %v340, %v338
  %v354 = vpack.c.bf16 %v344, %v342
  %v355 = vpack.c.bf16 %v348, %v346
  %v356 = vpack.c.bf16 %v352, %v350
  %v358 = vsel %vm307, %v212, 0
  %v361 = vsel %vm307, %v213, 0
  %363 = vmatprep.subr.bf16.mxu0 0
  %364 = vmatpush1.bf16.msra.mxu0 %v353
  %365 = vmatprep.subr.bf16.mxu0 0
  %366 = vmatpush1.bf16.msra.mxu0 %v354
  %367 = vmatprep.subr.bf16.mxu0 0
  %368 = vmatpush1.bf16.msra.mxu0 %v355
  %369 = vmatprep.subr.bf16.mxu0 0
  %370 = vmatpush1.bf16.msra.mxu0 %v356
  %371 = vmatprep.subr.bf16.mxu0 0
  %372 = vmatpush1.bf16.msra.mxu0 0
  %373 = vmatprep.subr.bf16.mxu0 0
  %374 = vmatpush1.bf16.msra.mxu0 0
  %375 = vmatprep.subr.bf16.mxu0 0
  %376 = vmatpush1.bf16.msra.mxu0 0
  %377 = vmatprep.subr.bf16.mxu0 0
  %378 = vmatpush1.bf16.msra.mxu0 0
  %379 = vmatprep.subr.bf16.mxu0 0
  %380 = vmatpush1.bf16.msra.mxu0 0
  %381 = vmatprep.subr.bf16.mxu0 0
  %382 = vmatpush1.bf16.msra.mxu0 0
  %383 = vmatprep.subr.bf16.mxu0 0
  %384 = vmatpush1.bf16.msra.mxu0 0
  %385 = vmatprep.subr.bf16.mxu0 0
  %386 = vmatpush1.bf16.msra.mxu0 0
  %387 = vmatprep.subr.bf16.mxu0 0
  %388 = vmatpush1.bf16.msra.mxu0 0
  %389 = vmatprep.subr.bf16.mxu0 0
  %390 = vmatpush1.bf16.msra.mxu0 0
  %391 = vmatprep.subr.bf16.mxu0 0
  %392 = vmatpush1.bf16.msra.mxu0 0
  %393 = vmatprep.subr.bf16.mxu0 0
  %394 = vmatpush1.bf16.msra.mxu0 0
  %395 = vmatprep.mubr.bf16.mxu0 0
  %396 = vmatmul.mubr.bf16.gmra.mrb[0].mxu0 %v358
  %v397 = vpop.f32.mrb[0].mxu0
  %v398 = vadd.f32 0.0, %v397
  %v399 = vpop.f32.mrb[0].mxu0
  %v400 = vpop.f32.mrb[0].mxu0
  %v401 = vadd.f32 0.0, %v400
  %v402 = vpop.f32.mrb[0].mxu0
  %403 = vmatprep.mubr.bf16.mxu0 0
  %404 = vmatmul.mubr.bf16.gmra.mrb[0].mxu0 %v361
  %v405 = vpop.f32.mrb[0].mxu0
  %v406 = vadd.f32 0.0, %v405
  %v407 = vpop.f32.mrb[0].mxu0
  %v408 = vpop.f32.mrb[0].mxu0
  %v409 = vadd.f32 0.0, %v408
  %v410 = vpop.f32.mrb[0].mxu0
  %411 = vdwg.mxu0
  %v412 = vsel %vm307, %v338, 0.0
  %v413 = vsel %vm307, %v340, 0.0
  %v414 = vadd.f32 %v412, %v413
  %v415 = vsel %vm307, %v342, 0.0
  %v416 = vadd.f32 %v414, %v415
  %v417 = vsel %vm307, %v344, 0.0
  %v418 = vadd.f32 %v416, %v417
  %v419 = vsel %vm307, %v346, 0.0
  %v420 = vadd.f32 %v418, %v419
  %v421 = vsel %vm307, %v348, 0.0
  %v422 = vadd.f32 %v420, %v421
  %v423 = vsel %vm307, %v350, 0.0
  %v424 = vadd.f32 %v422, %v423
  %v425 = vsel %vm307, %v352, 0.0
  %v426 = vadd.f32 %v424, %v425
  %v427 = vrot.slane %v426, 4
  %v428 = vadd.f32 %v426, %v427
  %v429 = vrot.slane %v428, 2
  %v430 = vadd.f32 %v428, %v429
  %v431 = vrot.slane %v430, 1
  %v432 = vadd.f32 %v430, %v431
  %v433 = vrcp.pop %v432
  %v434 = vmul.f32 %v398, %v433
  %v435 = vmul.f32 %v401, %v433
  %v436 = vmul.f32 %v406, %v433
  %v437 = vmul.f32 %v409, %v433
  %440 = vrot.lane.b32.xlu0 %v210, 64
  %v441 = vpop.permute.xlu0 %440
  %442 = vrot.lane.b32.xlu0 %v211, 64
  %v443 = vpop.permute.xlu0 %442
  %446 = vxpose.xlu0.c.b16.start [1/8] %v441, 128
  %447 = vxpose.xlu0.c.b16.cont [2/8] %v443, 128
  %448 = vxpose.xlu0.c.b16.cont [3/8] 0, 128
  %449 = vxpose.xlu0.c.b16.cont [4/8] 0, 128
  %450 = vxpose.xlu0.c.b16.cont [5/8] 0, 128
  %451 = vxpose.xlu0.c.b16.cont [6/8] 0, 128
  %452 = vxpose.xlu0.c.b16.cont [7/8] 0, 128
  %453 = vxpose.xlu0.c.b16.end [8/8] 0, 128
  %v454 = vpop.trf.xlu0
  %v455 = vpop.trf.xlu0
  %v456 = vpop.trf.xlu0
  %v457 = vpop.trf.xlu0
  %v458 = vpop.trf.xlu0
  %v459 = vpop.trf.xlu0
  %v460 = vpop.trf.xlu0
  %v461 = vpop.trf.xlu0
  %464 = vrot.lane.b32.xlu0 %v208, 64
  %v465 = vpop.permute.xlu0 %464
  %466 = vrot.lane.b32.xlu0 %v209, 64
  %v467 = vpop.permute.xlu0 %466
  %v471 = vsel %vm108, %v454, 0
  %v474 = vsel %vm108, %v455, 0
  %v477 = vsel %vm108, %v456, 0
  %v480 = vsel %vm108, %v457, 0
  %482 = vmatprep.subr.bf16.mxu0 0
  %483 = vmatpush1.bf16.msra.mxu0 %v465
  %484 = vmatprep.subr.bf16.mxu0 0
  %485 = vmatpush1.bf16.msra.mxu0 %v467
  %486 = vmatprep.subr.bf16.mxu0 0
  %487 = vmatpush1.bf16.msra.mxu0 0
  %488 = vmatprep.subr.bf16.mxu0 0
  %489 = vmatpush1.bf16.msra.mxu0 0
  %490 = vmatprep.subr.bf16.mxu0 0
  %491 = vmatpush1.bf16.msra.mxu0 0
  %492 = vmatprep.subr.bf16.mxu0 0
  %493 = vmatpush1.bf16.msra.mxu0 0
  %494 = vmatprep.subr.bf16.mxu0 0
  %495 = vmatpush1.bf16.msra.mxu0 0
  %496 = vmatprep.subr.bf16.mxu0 0
  %497 = vmatpush1.bf16.msra.mxu0 0
  %498 = vmatprep.subr.bf16.mxu0 0
  %499 = vmatpush1.bf16.msra.mxu0 0
  %500 = vmatprep.subr.bf16.mxu0 0
  %501 = vmatpush1.bf16.msra.mxu0 0
  %502 = vmatprep.subr.bf16.mxu0 0
  %503 = vmatpush1.bf16.msra.mxu0 0
  %504 = vmatprep.subr.bf16.mxu0 0
  %505 = vmatpush1.bf16.msra.mxu0 0
  %506 = vmatprep.subr.bf16.mxu0 0
  %507 = vmatpush1.bf16.msra.mxu0 0
  %508 = vmatprep.subr.bf16.mxu0 0
  %509 = vmatpush1.bf16.msra.mxu0 0
  %510 = vmatprep.subr.bf16.mxu0 0
  %511 = vmatpush1.bf16.msra.mxu0 0
  %512 = vmatprep.subr.bf16.mxu0 0
  %513 = vmatpush1.bf16.msra.mxu0 0
  %514 = vmatprep.mubr.bf16.mxu0 0
  %515 = vmatmul.mubr.bf16.gmra.mrb[0].mxu0 %v471
  %v516 = vpop.f32.mrb[0].mxu0
  %v517 = vadd.f32 0.0, %v516
  %v518 = vpop.f32.mrb[0].mxu0
  %v519 = vpop.f32.mrb[0].mxu0
  %v520 = vadd.f32 0.0, %v519
  %v521 = vpop.f32.mrb[0].mxu0
  %522 = vmatprep.mubr.bf16.mxu0 0
  %523 = vmatmul.mubr.bf16.gmra.mrb[0].mxu0 %v474
  %v524 = vpop.f32.mrb[0].mxu0
  %v525 = vadd.f32 0.0, %v524
  %v526 = vpop.f32.mrb[0].mxu0
  %v527 = vpop.f32.mrb[0].mxu0
  %v528 = vadd.f32 0.0, %v527
  %v529 = vpop.f32.mrb[0].mxu0
  %530 = vmatprep.mubr.bf16.mxu0 0
  %531 = vmatmul.mubr.bf16.gmra.mrb[0].mxu0 %v477
  %v532 = vpop.f32.mrb[0].mxu0
  %v533 = vadd.f32 0.0, %v532
  %v534 = vpop.f32.mrb[0].mxu0
  %v535 = vpop.f32.mrb[0].mxu0
  %v536 = vadd.f32 0.0, %v535
  %v537 = vpop.f32.mrb[0].mxu0
  %538 = vmatprep.mubr.bf16.mxu0 0
  %539 = vmatmul.mubr.bf16.gmra.mrb[0].mxu0 %v480
  %v540 = vpop.f32.mrb[0].mxu0
  %v541 = vadd.f32 0.0, %v540
  %v542 = vpop.f32.mrb[0].mxu0
  %v543 = vpop.f32.mrb[0].mxu0
  %v544 = vadd.f32 0.0, %v543
  %v545 = vpop.f32.mrb[0].mxu0
  %546 = vdwg.mxu0
  %v547 = vsel %vm307, %v517, -inf
  %v548 = vsel %vm307, %v520, -inf
  %v549 = vsel %vm307, %v525, -inf
  %v550 = vsel %vm307, %v528, -inf
  %v551 = vsel %vm307, %v533, -inf
  %v552 = vmax.f32 %v547, %v551
  %v553 = vsel %vm307, %v536, -inf
  %v554 = vmax.f32 %v548, %v553
  %v555 = vsel %vm307, %v541, -inf
  %v556 = vmax.f32 %v549, %v555
  %v557 = vsel %vm307, %v544, -inf
  %v558 = vmax.f32 %v550, %v557
  %v559 = vmax.f32 %v552, %v554
  %v560 = vmax.f32 %v556, %v558
  %v561 = vmax.f32 %v559, %v560
  %v562 = vrot.slane %v561, 4
  %v563 = vmax.f32 %v561, %v562
  %v564 = vrot.slane %v563, 2
  %v565 = vmax.f32 %v563, %v564
  %v566 = vrot.slane %v565, 1
  %v567 = vmax.f32 %v565, %v566
  %v568 = vsub.f32 %v517, %v567
  %v569 = vsub.f32 %v520, %v567
  %v570 = vsub.f32 %v525, %v567
  %v571 = vsub.f32 %v528, %v567
  %v572 = vsub.f32 %v533, %v567
  %v573 = vsub.f32 %v536, %v567
  %v574 = vsub.f32 %v541, %v567
  %v575 = vsub.f32 %v544, %v567
  %v576 = vmul.f32 %v568, 1.442695
  %v577 = vpow.pop %v576
  %v578 = vmul.f32 %v569, 1.442695
  %v579 = vpow.pop %v578
  %v580 = vmul.f32 %v570, 1.442695
  %v581 = vpow.pop %v580
  %v582 = vmul.f32 %v571, 1.442695
  %v583 = vpow.pop %v582
  %v584 = vmul.f32 %v572, 1.442695
  %v585 = vpow.pop %v584
  %v586 = vmul.f32 %v573, 1.442695
  %v587 = vpow.pop %v586
  %v588 = vmul.f32 %v574, 1.442695
  %v589 = vpow.pop %v588
  %v590 = vmul.f32 %v575, 1.442695
  %v591 = vpow.pop %v590
  %v592 = vpack.c.bf16 %v579, %v577
  %v593 = vpack.c.bf16 %v583, %v581
  %v594 = vpack.c.bf16 %v587, %v585
  %v595 = vpack.c.bf16 %v591, %v589
  %598 = vrot.lane.b32.xlu0 %v212, 64
  %v599 = vpop.permute.xlu0 %598
  %600 = vrot.lane.b32.xlu0 %v213, 64
  %v601 = vpop.permute.xlu0 %600
  %v603 = vsel %vm307, %v599, 0
  %v606 = vsel %vm307, %v601, 0
  %608 = vmatprep.subr.bf16.mxu0 0
  %609 = vmatpush1.bf16.msra.mxu0 %v592
  %610 = vmatprep.subr.bf16.mxu0 0
  %611 = vmatpush1.bf16.msra.mxu0 %v593
  %612 = vmatprep.subr.bf16.mxu0 0
  %613 = vmatpush1.bf16.msra.mxu0 %v594
  %614 = vmatprep.subr.bf16.mxu0 0
  %615 = vmatpush1.bf16.msra.mxu0 %v595
  %616 = vmatprep.subr.bf16.mxu0 0
  %617 = vmatpush1.bf16.msra.mxu0 0
  %618 = vmatprep.subr.bf16.mxu0 0
  %619 = vmatpush1.bf16.msra.mxu0 0
  %620 = vmatprep.subr.bf16.mxu0 0
  %621 = vmatpush1.bf16.msra.mxu0 0
  %622 = vmatprep.subr.bf16.mxu0 0
  %623 = vmatpush1.bf16.msra.mxu0 0
  %624 = vmatprep.subr.bf16.mxu0 0
  %625 = vmatpush1.bf16.msra.mxu0 0
  %626 = vmatprep.subr.bf16.mxu0 0
  %627 = vmatpush1.bf16.msra.mxu0 0
  %628 = vmatprep.subr.bf16.mxu0 0
  %629 = vmatpush1.bf16.msra.mxu0 0
  %630 = vmatprep.subr.bf16.mxu0 0
  %631 = vmatpush1.bf16.msra.mxu0 0
  %632 = vmatprep.subr.bf16.mxu0 0
  %633 = vmatpush1.bf16.msra.mxu0 0
  %634 = vmatprep.subr.bf16.mxu0 0
  %635 = vmatpush1.bf16.msra.mxu0 0
  %636 = vmatprep.subr.bf16.mxu0 0
  %637 = vmatpush1.bf16.msra.mxu0 0
  %638 = vmatprep.subr.bf16.mxu0 0
  %639 = vmatpush1.bf16.msra.mxu0 0
  %640 = vmatprep.mubr.bf16.mxu0 0
  %641 = vmatmul.mubr.bf16.gmra.mrb[0].mxu0 %v603
  %v642 = vpop.f32.mrb[0].mxu0
  %v643 = vadd.f32 0.0, %v642
  %v644 = vpop.f32.mrb[0].mxu0
  %v645 = vpop.f32.mrb[0].mxu0
  %v646 = vadd.f32 0.0, %v645
  %v647 = vpop.f32.mrb[0].mxu0
  %648 = vmatprep.mubr.bf16.mxu0 0
  %649 = vmatmul.mubr.bf16.gmra.mrb[0].mxu0 %v606
  %v650 = vpop.f32.mrb[0].mxu0
  %v651 = vadd.f32 0.0, %v650
  %v652 = vpop.f32.mrb[0].mxu0
  %v653 = vpop.f32.mrb[0].mxu0
  %v654 = vadd.f32 0.0, %v653
  %v655 = vpop.f32.mrb[0].mxu0
  %656 = vdwg.mxu0
  %v657 = vsel %vm307, %v577, 0.0
  %v658 = vsel %vm307, %v579, 0.0
  %v659 = vadd.f32 %v657, %v658
  %v660 = vsel %vm307, %v581, 0.0
  %v661 = vadd.f32 %v659, %v660
  %v662 = vsel %vm307, %v583, 0.0
  %v663 = vadd.f32 %v661, %v662
  %v664 = vsel %vm307, %v585, 0.0
  %v665 = vadd.f32 %v663, %v664
  %v666 = vsel %vm307, %v587, 0.0
  %v667 = vadd.f32 %v665, %v666
  %v668 = vsel %vm307, %v589, 0.0
  %v669 = vadd.f32 %v667, %v668
  %v670 = vsel %vm307, %v591, 0.0
  %v671 = vadd.f32 %v669, %v670
  %v672 = vrot.slane %v671, 4
  %v673 = vadd.f32 %v671, %v672
  %v674 = vrot.slane %v673, 2
  %v675 = vadd.f32 %v673, %v674
  %v676 = vrot.slane %v675, 1
  %v677 = vadd.f32 %v675, %v676
  %v678 = vrcp.pop %v677
  %v679 = vmul.f32 %v643, %v678
  %v680 = vmul.f32 %v646, %v678
  %v681 = vmul.f32 %v651, %v678
  %v682 = vmul.f32 %v654, %v678
  %687 = vrot.lane.b32.xlu0 %v679, 64
  %v688 = vpop.permute.xlu0 %687
  %689 = vrot.lane.b32.xlu0 %v680, 64
  %v690 = vpop.permute.xlu0 %689
  %691 = vrot.lane.b32.xlu0 %v681, 64
  %v692 = vpop.permute.xlu0 %691
  %693 = vrot.lane.b32.xlu0 %v682, 64
  %v694 = vpop.permute.xlu0 %693
  %v699 = vsel %vm307, %v434, %v688
  %v700 = vsel %vm307, %v435, %v690
  %v701 = vsel %vm307, %v436, %v692
  %v702 = vsel %vm307, %v437, %v694
  %v703 = vld [vmem:[%s3] sm:$0xff]
  %v704 = vld [vmem:[%s3 + $0x8] sm:$0xff]
  %v705 = vld [vmem:[%s3 + $0x10] sm:$0xff]
  %v706 = vld [vmem:[%s3 + $0x18] sm:$0xff]
  %v707 = vld [vmem:[%s4] sm:$0xff]
  %v708 = vld [vmem:[%s4 + $0x8] sm:$0xff]
  %v709 = vld [vmem:[%s4 + $0x10] sm:$0xff]
  %v710 = vld [vmem:[%s4 + $0x18] sm:$0xff]
  %v711 = vadd.f32 %v699, %v700
  %v712 = vadd.f32 %v711, %v701
  %v713 = vadd.f32 %v712, %v702
  %v714 = vrot.slane %v713, 4
  %v715 = vadd.f32 %v713, %v714
  %v716 = vrot.slane %v715, 2
  %v717 = vadd.f32 %v715, %v716
  %v718 = vrot.slane %v717, 1
  %v719 = vadd.f32 %v717, %v718
  %v720 = vrcp.pop 32.0
  %v721 = vmul.f32 %v719, %v720
  %v722 = vsub.f32 %v699, %v721
  %v723 = vsub.f32 %v700, %v721
  %v724 = vsub.f32 %v701, %v721
  %v725 = vsub.f32 %v702, %v721
  %v726 = vmul.f32 %v722, %v722
  %v727 = vmul.f32 %v723, %v723
  %v728 = vmul.f32 %v724, %v724
  %v729 = vmul.f32 %v725, %v725
  %v730 = vadd.f32 %v726, %v727
  %v731 = vadd.f32 %v730, %v728
  %v732 = vadd.f32 %v731, %v729
  %v733 = vrot.slane %v732, 4
  %v734 = vadd.f32 %v732, %v733
  %v735 = vrot.slane %v734, 2
  %v736 = vadd.f32 %v734, %v735
  %v737 = vrot.slane %v736, 1
  %v738 = vadd.f32 %v736, %v737
  %v739 = vmul.f32 %v738, %v720
  %v740 = vadd.f32 %v739, 1e-05
  %v741 = vrsqrt.pop %v740
  %v742 = vmul.f32 %v722, %v741
  %v743 = vmul.f32 %v723, %v741
  %v744 = vmul.f32 %v724, %v741
  %v745 = vmul.f32 %v725, %v741
  %747 = vset.pattern.permute.xlu0 0
  %748 = vperm.xlu0 %747, %v703
  %v749 = vpop.permute.xlu0 %748
  %752 = vset.pattern.permute.xlu0 0
  %753 = vperm.xlu0 %752, %v704
  %v754 = vpop.permute.xlu0 %753
  %757 = vset.pattern.permute.xlu0 0
  %758 = vperm.xlu0 %757, %v705
  %v759 = vpop.permute.xlu0 %758
  %762 = vset.pattern.permute.xlu0 0
  %763 = vperm.xlu0 %762, %v706
  %v764 = vpop.permute.xlu0 %763
  %v766 = vmul.f32 %v742, %v749
  %v767 = vmul.f32 %v743, %v754
  %v768 = vmul.f32 %v744, %v759
  %v769 = vmul.f32 %v745, %v764
  %771 = vset.pattern.permute.xlu0 0
  %772 = vperm.xlu0 %771, %v707
  %v773 = vpop.permute.xlu0 %772
  %776 = vset.pattern.permute.xlu0 0
  %777 = vperm.xlu0 %776, %v708
  %v778 = vpop.permute.xlu0 %777
  %781 = vset.pattern.permute.xlu0 0
  %782 = vperm.xlu0 %781, %v709
  %v783 = vpop.permute.xlu0 %782
  %786 = vset.pattern.permute.xlu0 0
  %787 = vperm.xlu0 %786, %v710
  %v788 = vpop.permute.xlu0 %787
  %v790 = vadd.f32 %v766, %v773
  %v791 = vadd.f32 %v767, %v778
  %v792 = vadd.f32 %v768, %v783
  %v793 = vadd.f32 %v769, %v788
  %v794 = vadd.f32 %v50, %v790
  %v795 = vadd.f32 %v51, %v791
  %v796 = vadd.f32 %v52, %v792
  %v797 = vadd.f32 %v53, %v793
  %v798 = vpack.c.bf16 %v795, %v794
  %v799 = vpack.c.bf16 %v797, %v796
  %v804 = vunpack.c.l.b16 %v46
  %v805 = vunpack.c.l.b16 %v47
  %v806 = vunpack.c.l.b16 %v48
  %v807 = vunpack.c.l.b16 %v49
  %v808 = vpack.c.b16 %v805, %v804
  %v809 = vpack.c.b16 %v807, %v806
  %v812 = vld [vmem:[%s5] sm:$0xf]
  %v813 = vld [vmem:[%s5 + $0x4] sm:$0xf]
  %v814 = vld [vmem:[%s5 + $0x8] sm:$0xf]
  %v815 = vld [vmem:[%s5 + $0xc] sm:$0xf]
  %v816 = vld [vmem:[%s5 + $0x10] sm:$0xf]
  %v817 = vld [vmem:[%s5 + $0x14] sm:$0xf]
  %v818 = vld [vmem:[%s5 + $0x18] sm:$0xf]
  %v819 = vld [vmem:[%s5 + $0x1c] sm:$0xf]
  %v820 = vld [vmem:[%s5 + $0x20] sm:$0xf]
  %v821 = vld [vmem:[%s5 + $0x24] sm:$0xf]
  %v822 = vld [vmem:[%s5 + $0x28] sm:$0xf]
  %v823 = vld [vmem:[%s5 + $0x2c] sm:$0xf]
  %v836 = vunpack.c.l.b16 %v812
  %v837 = vunpack.c.l.b16 %v813
  %v838 = vunpack.c.l.b16 %v814
  %v839 = vunpack.c.l.b16 %v815
  %v840 = vunpack.c.l.b16 %v816
  %v841 = vunpack.c.l.b16 %v817
  %v842 = vunpack.c.l.b16 %v818
  %v843 = vunpack.c.l.b16 %v819
  %v844 = vunpack.c.l.b16 %v820
  %v845 = vunpack.c.l.b16 %v821
  %v846 = vunpack.c.l.b16 %v822
  %v847 = vunpack.c.l.b16 %v823
  %v848 = vpack.c.b16 %v837, %v836
  %v849 = vpack.c.b16 %v839, %v838
  %v850 = vpack.c.b16 %v841, %v840
  %v851 = vpack.c.b16 %v843, %v842
  %v852 = vpack.c.b16 %v845, %v844
  %v853 = vpack.c.b16 %v847, %v846
  %v855 = vsel %vm307, %v848, 0
  %v858 = vsel %vm307, %v849, 0
  %v861 = vsel %vm307, %v850, 0
  %v864 = vsel %vm307, %v851, 0
  %v867 = vsel %vm307, %v852, 0
  %v870 = vsel %vm307, %v853, 0
  %872 = vmatprep.subr.bf16.mxu0 0
  %873 = vmatpush1.bf16.msra.mxu0 %v798
  %874 = vmatprep.subr.bf16.mxu0 0
  %875 = vmatpush1.bf16.msra.mxu0 %v799
  %876 = vmatprep.subr.bf16.mxu0 0
  %877 = vmatpush1.bf16.msra.mxu0 %v808
  %878 = vmatprep.subr.bf16.mxu0 0
  %879 = vmatpush1.bf16.msra.mxu0 %v809
  %880 = vmatprep.subr.bf16.mxu0 0
  %881 = vmatpush1.bf16.msra.mxu0 0
  %882 = vmatprep.subr.bf16.mxu0 0
  %883 = vmatpush1.bf16.msra.mxu0 0
  %884 = vmatprep.subr.bf16.mxu0 0
  %885 = vmatpush1.bf16.msra.mxu0 0
  %886 = vmatprep.subr.bf16.mxu0 0
  %887 = vmatpush1.bf16.msra.mxu0 0
  %888 = vmatprep.subr.bf16.mxu0 0
  %889 = vmatpush1.bf16.msra.mxu0 0
  %890 = vmatprep.subr.bf16.mxu0 0
  %891 = vmatpush1.bf16.msra.mxu0 0
  %892 = vmatprep.subr.bf16.mxu0 0
  %893 = vmatpush1.bf16.msra.mxu0 0
  %894 = vmatprep.subr.bf16.mxu0 0
  %895 = vmatpush1.bf16.msra.mxu0 0
  %896 = vmatprep.subr.bf16.mxu0 0
  %897 = vmatpush1.bf16.msra.mxu0 0
  %898 = vmatprep.subr.bf16.mxu0 0
  %899 = vmatpush1.bf16.msra.mxu0 0
  %900 = vmatprep.subr.bf16.mxu0 0
  %901 = vmatpush1.bf16.msra.mxu0 0
  %902 = vmatprep.subr.bf16.mxu0 0
  %903 = vmatpush1.bf16.msra.mxu0 0
  %904 = vmatprep.mubr.bf16.mxu0 0
  %905 = vmatmul.mubr.bf16.gmra.mrb[0].mxu0 %v855
  %v906 = vpop.f32.mrb[0].mxu0
  %v907 = vadd.f32 0.0, %v906
  %v908 = vpop.f32.mrb[0].mxu0
  %v909 = vpop.f32.mrb[0].mxu0
  %v910 = vadd.f32 0.0, %v909
  %v911 = vpop.f32.mrb[0].mxu0
  %912 = vmatprep.mubr.bf16.mxu0 0
  %913 = vmatmul.mubr.bf16.gmra.mrb[0].mxu0 %v858
  %v914 = vpop.f32.mrb[0].mxu0
  %v915 = vadd.f32 0.0, %v914
  %v916 = vpop.f32.mrb[0].mxu0
  %v917 = vpop.f32.mrb[0].mxu0
  %v918 = vadd.f32 0.0, %v917
  %v919 = vpop.f32.mrb[0].mxu0
  %920 = vmatprep.mubr.bf16.mxu0 0
  %921 = vmatmul.mubr.bf16.gmra.mrb[0].mxu0 %v861
  %v922 = vpop.f32.mrb[0].mxu0
  %v923 = vadd.f32 0.0, %v922
  %v924 = vpop.f32.mrb[0].mxu0
  %v925 = vpop.f32.mrb[0].mxu0
  %v926 = vadd.f32 0.0, %v925
  %v927 = vpop.f32.mrb[0].mxu0
  %928 = vmatprep.mubr.bf16.mxu0 0
  %929 = vmatmul.mubr.bf16.gmra.mrb[0].mxu0 %v864
  %v930 = vpop.f32.mrb[0].mxu0
  %v931 = vadd.f32 0.0, %v930
  %v932 = vpop.f32.mrb[0].mxu0
  %v933 = vpop.f32.mrb[0].mxu0
  %v934 = vadd.f32 0.0, %v933
  %v935 = vpop.f32.mrb[0].mxu0
  %936 = vmatprep.mubr.bf16.mxu0 0
  %937 = vmatmul.mubr.bf16.gmra.mrb[0].mxu0 %v867
  %v938 = vpop.f32.mrb[0].mxu0
  %v939 = vadd.f32 0.0, %v938
  %v940 = vpop.f32.mrb[0].mxu0
  %v941 = vpop.f32.mrb[0].mxu0
  %v942 = vadd.f32 0.0, %v941
  %v943 = vpop.f32.mrb[0].mxu0
  %944 = vmatprep.mubr.bf16.mxu0 0
  %945 = vmatmul.mubr.bf16.gmra.mrb[0].mxu0 %v870
  %v946 = vpop.f32.mrb[0].mxu0
  %v947 = vadd.f32 0.0, %v946
  %v948 = vpop.f32.mrb[0].mxu0
  %v949 = vpop.f32.mrb[0].mxu0
  %v950 = vadd.f32 0.0, %v949
  %v951 = vpop.f32.mrb[0].mxu0
  %952 = vdwg.mxu0
  %v953 = vpack.c.bf16 %v910, %v907
  %v954 = vpack.c.bf16 %v918, %v915
  %v955 = vpack.c.bf16 %v926, %v923
  %v956 = vpack.c.bf16 %v934, %v931
  %v957 = vpack.c.bf16 %v942, %v939
  %v958 = vpack.c.bf16 %v950, %v947
  %959 = vxpose.xlu0.c.b16.start [1/8] %v955, 128
  %960 = vxpose.xlu0.c.b16.cont [2/8] %v956, 128
  %961 = vxpose.xlu0.c.b16.cont [3/8] 0, 128
  %962 = vxpose.xlu0.c.b16.cont [4/8] 0, 128
  %963 = vxpose.xlu0.c.b16.cont [5/8] 0, 128
  %964 = vxpose.xlu0.c.b16.cont [6/8] 0, 128
  %965 = vxpose.xlu0.c.b16.cont [7/8] 0, 128
  %966 = vxpose.xlu0.c.b16.end [8/8] 0, 128
  %v967 = vpop.trf.xlu0
  %v968 = vpop.trf.xlu0
  %v969 = vpop.trf.xlu0
  %v970 = vpop.trf.xlu0
  %v971 = vpop.trf.xlu0
  %v972 = vpop.trf.xlu0
  %v973 = vpop.trf.xlu0
  %v974 = vpop.trf.xlu0
  %v976 = vsel %vm108, %v967, 0
  %v979 = vsel %vm108, %v968, 0
  %v982 = vsel %vm108, %v969, 0
  %v985 = vsel %vm108, %v970, 0
  %987 = vmatprep.subr.bf16.mxu0 0
  %988 = vmatpush1.bf16.msra.mxu0 %v953
  %989 = vmatprep.subr.bf16.mxu0 0
  %990 = vmatpush1.bf16.msra.mxu0 %v954
  %991 = vmatprep.subr.bf16.mxu0 0
  %992 = vmatpush1.bf16.msra.mxu0 0
  %993 = vmatprep.subr.bf16.mxu0 0
  %994 = vmatpush1.bf16.msra.mxu0 0
  %995 = vmatprep.subr.bf16.mxu0 0
  %996 = vmatpush1.bf16.msra.mxu0 0
  %997 = vmatprep.subr.bf16.mxu0 0
  %998 = vmatpush1.bf16.msra.mxu0 0
  %999 = vmatprep.subr.bf16.mxu0 0
  %1000 = vmatpush1.bf16.msra.mxu0 0
  %1001 = vmatprep.subr.bf16.mxu0 0
  %1002 = vmatpush1.bf16.msra.mxu0 0
  %1003 = vmatprep.subr.bf16.mxu0 0
  %1004 = vmatpush1.bf16.msra.mxu0 0
  %1005 = vmatprep.subr.bf16.mxu0 0
  %1006 = vmatpush1.bf16.msra.mxu0 0
  %1007 = vmatprep.subr.bf16.mxu0 0
  %1008 = vmatpush1.bf16.msra.mxu0 0
  %1009 = vmatprep.subr.bf16.mxu0 0
  %1010 = vmatpush1.bf16.msra.mxu0 0
  %1011 = vmatprep.subr.bf16.mxu0 0
  %1012 = vmatpush1.bf16.msra.mxu0 0
  %1013 = vmatprep.subr.bf16.mxu0 0
  %1014 = vmatpush1.bf16.msra.mxu0 0
  %1015 = vmatprep.subr.bf16.mxu0 0
  %1016 = vmatpush1.bf16.msra.mxu0 0
  %1017 = vmatprep.subr.bf16.mxu0 0
  %1018 = vmatpush1.bf16.msra.mxu0 0
  %1019 = vmatprep.mubr.bf16.mxu0 0
  %1020 = vmatmul.mubr.bf16.gmra.mrb[0].mxu0 %v976
  %v1021 = vpop.f32.mrb[0].mxu0
  %v1022 = vadd.f32 0.0, %v1021
  %v1023 = vpop.f32.mrb[0].mxu0
  %v1024 = vpop.f32.mrb[0].mxu0
  %v1025 = vadd.f32 0.0, %v1024
  %v1026 = vpop.f32.mrb[0].mxu0
  %1027 = vmatprep.mubr.bf16.mxu0 0
  %1028 = vmatmul.mubr.bf16.gmra.mrb[0].mxu0 %v979
  %v1029 = vpop.f32.mrb[0].mxu0
  %v1030 = vadd.f32 0.0, %v1029
  %v1031 = vpop.f32.mrb[0].mxu0
  %v1032 = vpop.f32.mrb[0].mxu0
  %v1033 = vadd.f32 0.0, %v1032
  %v1034 = vpop.f32.mrb[0].mxu0
  %1035 = vmatprep.mubr.bf16.mxu0 0
  %1036 = vmatmul.mubr.bf16.gmra.mrb[0].mxu0 %v982
  %v1037 = vpop.f32.mrb[0].mxu0
  %v1038 = vadd.f32 0.0, %v1037
  %v1039 = vpop.f32.mrb[0].mxu0
  %v1040 = vpop.f32.mrb[0].mxu0
  %v1041 = vadd.f32 0.0, %v1040
  %v1042 = vpop.f32.mrb[0].mxu0
  %1043 = vmatprep.mubr.bf16.mxu0 0
  %1044 = vmatmul.mubr.bf16.gmra.mrb[0].mxu0 %v985
  %v1045 = vpop.f32.mrb[0].mxu0
  %v1046 = vadd.f32 0.0, %v1045
  %v1047 = vpop.f32.mrb[0].mxu0
  %v1048 = vpop.f32.mrb[0].mxu0
  %v1049 = vadd.f32 0.0, %v1048
  %v1050 = vpop.f32.mrb[0].mxu0
  %1051 = vdwg.mxu0
  %v1052 = vsel %vm307, %v1022, -inf
  %v1053 = vsel %vm307, %v1025, -inf
  %v1054 = vsel %vm307, %v1030, -inf
  %v1055 = vsel %vm307, %v1033, -inf
  %v1056 = vsel %vm307, %v1038, -inf
  %v1057 = vmax.f32 %v1052, %v1056
  %v1058 = vsel %vm307, %v1041, -inf
  %v1059 = vmax.f32 %v1053, %v1058
  %v1060 = vsel %vm307, %v1046, -inf
  %v1061 = vmax.f32 %v1054, %v1060
  %v1062 = vsel %vm307, %v1049, -inf
  %v1063 = vmax.f32 %v1055, %v1062
  %v1064 = vmax.f32 %v1057, %v1059
  %v1065 = vmax.f32 %v1061, %v1063
  %v1066 = vmax.f32 %v1064, %v1065
  %v1067 = vrot.slane %v1066, 4
  %v1068 = vmax.f32 %v1066, %v1067
  %v1069 = vrot.slane %v1068, 2
  %v1070 = vmax.f32 %v1068, %v1069
  %v1071 = vrot.slane %v1070, 1
  %v1072 = vmax.f32 %v1070, %v1071
  %v1073 = vsub.f32 %v1022, %v1072
  %v1074 = vsub.f32 %v1025, %v1072
  %v1075 = vsub.f32 %v1030, %v1072
  %v1076 = vsub.f32 %v1033, %v1072
  %v1077 = vsub.f32 %v1038, %v1072
  %v1078 = vsub.f32 %v1041, %v1072
  %v1079 = vsub.f32 %v1046, %v1072
  %v1080 = vsub.f32 %v1049, %v1072
  %v1081 = vmul.f32 %v1073, 1.442695
  %v1082 = vpow.pop %v1081
  %v1083 = vmul.f32 %v1074, 1.442695
  %v1084 = vpow.pop %v1083
  %v1085 = vmul.f32 %v1075, 1.442695
  %v1086 = vpow.pop %v1085
  %v1087 = vmul.f32 %v1076, 1.442695
  %v1088 = vpow.pop %v1087
  %v1089 = vmul.f32 %v1077, 1.442695
  %v1090 = vpow.pop %v1089
  %v1091 = vmul.f32 %v1078, 1.442695
  %v1092 = vpow.pop %v1091
  %v1093 = vmul.f32 %v1079, 1.442695
  %v1094 = vpow.pop %v1093
  %v1095 = vmul.f32 %v1080, 1.442695
  %v1096 = vpow.pop %v1095
  %v1097 = vpack.c.bf16 %v1084, %v1082
  %v1098 = vpack.c.bf16 %v1088, %v1086
  %v1099 = vpack.c.bf16 %v1092, %v1090
  %v1100 = vpack.c.bf16 %v1096, %v1094
  %v1102 = vsel %vm307, %v957, 0
  %v1105 = vsel %vm307, %v958, 0
  %1107 = vmatprep.subr.bf16.mxu0 0
  %1108 = vmatpush1.bf16.msra.mxu0 %v1097
  %1109 = vmatprep.subr.bf16.mxu0 0
  %1110 = vmatpush1.bf16.msra.mxu0 %v1098
  %1111 = vmatprep.subr.bf16.mxu0 0
  %1112 = vmatpush1.bf16.msra.mxu0 %v1099
  %1113 = vmatprep.subr.bf16.mxu0 0
  %1114 = vmatpush1.bf16.msra.mxu0 %v1100
  %1115 = vmatprep.subr.bf16.mxu0 0
  %1116 = vmatpush1.bf16.msra.mxu0 0
  %1117 = vmatprep.subr.bf16.mxu0 0
  %1118 = vmatpush1.bf16.msra.mxu0 0
  %1119 = vmatprep.subr.bf16.mxu0 0
  %1120 = vmatpush1.bf16.msra.mxu0 0
  %1121 = vmatprep.subr.bf16.mxu0 0
  %1122 = vmatpush1.bf16.msra.mxu0 0
  %1123 = vmatprep.subr.bf16.mxu0 0
  %1124 = vmatpush1.bf16.msra.mxu0 0
  %1125 = vmatprep.subr.bf16.mxu0 0
  %1126 = vmatpush1.bf16.msra.mxu0 0
  %1127 = vmatprep.subr.bf16.mxu0 0
  %1128 = vmatpush1.bf16.msra.mxu0 0
  %1129 = vmatprep.subr.bf16.mxu0 0
  %1130 = vmatpush1.bf16.msra.mxu0 0
  %1131 = vmatprep.subr.bf16.mxu0 0
  %1132 = vmatpush1.bf16.msra.mxu0 0
  %1133 = vmatprep.subr.bf16.mxu0 0
  %1134 = vmatpush1.bf16.msra.mxu0 0
  %1135 = vmatprep.subr.bf16.mxu0 0
  %1136 = vmatpush1.bf16.msra.mxu0 0
  %1137 = vmatprep.subr.bf16.mxu0 0
  %1138 = vmatpush1.bf16.msra.mxu0 0
  %1139 = vmatprep.mubr.bf16.mxu0 0
  %1140 = vmatmul.mubr.bf16.gmra.mrb[0].mxu0 %v1102
  %v1141 = vpop.f32.mrb[0].mxu0
  %v1142 = vadd.f32 0.0, %v1141
  %v1143 = vpop.f32.mrb[0].mxu0
  %v1144 = vpop.f32.mrb[0].mxu0
  %v1145 = vadd.f32 0.0, %v1144
  %v1146 = vpop.f32.mrb[0].mxu0
  %1147 = vmatprep.mubr.bf16.mxu0 0
  %1148 = vmatmul.mubr.bf16.gmra.mrb[0].mxu0 %v1105
  %v1149 = vpop.f32.mrb[0].mxu0
  %v1150 = vadd.f32 0.0, %v1149
  %v1151 = vpop.f32.mrb[0].mxu0
  %v1152 = vpop.f32.mrb[0].mxu0
  %v1153 = vadd.f32 0.0, %v1152
  %v1154 = vpop.f32.mrb[0].mxu0
  %1155 = vdwg.mxu0
  %v1156 = vsel %vm307, %v1082, 0.0
  %v1157 = vsel %vm307, %v1084, 0.0
  %v1158 = vadd.f32 %v1156, %v1157
  %v1159 = vsel %vm307, %v1086, 0.0
  %v1160 = vadd.f32 %v1158, %v1159
  %v1161 = vsel %vm307, %v1088, 0.0
  %v1162 = vadd.f32 %v1160, %v1161
  %v1163 = vsel %vm307, %v1090, 0.0
  %v1164 = vadd.f32 %v1162, %v1163
  %v1165 = vsel %vm307, %v1092, 0.0
  %v1166 = vadd.f32 %v1164, %v1165
  %v1167 = vsel %vm307, %v1094, 0.0
  %v1168 = vadd.f32 %v1166, %v1167
  %v1169 = vsel %vm307, %v1096, 0.0
  %v1170 = vadd.f32 %v1168, %v1169
  %v1171 = vrot.slane %v1170, 4
  %v1172 = vadd.f32 %v1170, %v1171
  %v1173 = vrot.slane %v1172, 2
  %v1174 = vadd.f32 %v1172, %v1173
  %v1175 = vrot.slane %v1174, 1
  %v1176 = vadd.f32 %v1174, %v1175
  %v1177 = vrcp.pop %v1176
  %v1178 = vmul.f32 %v1142, %v1177
  %v1179 = vmul.f32 %v1145, %v1177
  %v1180 = vmul.f32 %v1150, %v1177
  %v1181 = vmul.f32 %v1153, %v1177
  %1184 = vrot.lane.b32.xlu0 %v955, 64
  %v1185 = vpop.permute.xlu0 %1184
  %1186 = vrot.lane.b32.xlu0 %v956, 64
  %v1187 = vpop.permute.xlu0 %1186
  %1190 = vxpose.xlu0.c.b16.start [1/8] %v1185, 128
  %1191 = vxpose.xlu0.c.b16.cont [2/8] %v1187, 128
  %1192 = vxpose.xlu0.c.b16.cont [3/8] 0, 128
  %1193 = vxpose.xlu0.c.b16.cont [4/8] 0, 128
  %1194 = vxpose.xlu0.c.b16.cont [5/8] 0, 128
  %1195 = vxpose.xlu0.c.b16.cont [6/8] 0, 128
  %1196 = vxpose.xlu0.c.b16.cont [7/8] 0, 128
  %1197 = vxpose.xlu0.c.b16.end [8/8] 0, 128
  %v1198 = vpop.trf.xlu0
  %v1199 = vpop.trf.xlu0
  %v1200 = vpop.trf.xlu0
  %v1201 = vpop.trf.xlu0
  %v1202 = vpop.trf.xlu0
  %v1203 = vpop.trf.xlu0
  %v1204 = vpop.trf.xlu0
  %v1205 = vpop.trf.xlu0
  %1208 = vrot.lane.b32.xlu0 %v953, 64
  %v1209 = vpop.permute.xlu0 %1208
  %1210 = vrot.lane.b32.xlu0 %v954, 64
  %v1211 = vpop.permute.xlu0 %1210
  %v1215 = vsel %vm108, %v1198, 0
  %v1218 = vsel %vm108, %v1199, 0
  %v1221 = vsel %vm108, %v1200, 0
  %v1224 = vsel %vm108, %v1201, 0
  %1226 = vmatprep.subr.bf16.mxu0 0
  %1227 = vmatpush1.bf16.msra.mxu0 %v1209
  %1228 = vmatprep.subr.bf16.mxu0 0
  %1229 = vmatpush1.bf16.msra.mxu0 %v1211
  %1230 = vmatprep.subr.bf16.mxu0 0
  %1231 = vmatpush1.bf16.msra.mxu0 0
  %1232 = vmatprep.subr.bf16.mxu0 0
  %1233 = vmatpush1.bf16.msra.mxu0 0
  %1234 = vmatprep.subr.bf16.mxu0 0
  %1235 = vmatpush1.bf16.msra.mxu0 0
  %1236 = vmatprep.subr.bf16.mxu0 0
  %1237 = vmatpush1.bf16.msra.mxu0 0
  %1238 = vmatprep.subr.bf16.mxu0 0
  %1239 = vmatpush1.bf16.msra.mxu0 0
  %1240 = vmatprep.subr.bf16.mxu0 0
  %1241 = vmatpush1.bf16.msra.mxu0 0
  %1242 = vmatprep.subr.bf16.mxu0 0
  %1243 = vmatpush1.bf16.msra.mxu0 0
  %1244 = vmatprep.subr.bf16.mxu0 0
  %1245 = vmatpush1.bf16.msra.mxu0 0
  %1246 = vmatprep.subr.bf16.mxu0 0
  %1247 = vmatpush1.bf16.msra.mxu0 0
  %1248 = vmatprep.subr.bf16.mxu0 0
  %1249 = vmatpush1.bf16.msra.mxu0 0
  %1250 = vmatprep.subr.bf16.mxu0 0
  %1251 = vmatpush1.bf16.msra.mxu0 0
  %1252 = vmatprep.subr.bf16.mxu0 0
  %1253 = vmatpush1.bf16.msra.mxu0 0
  %1254 = vmatprep.subr.bf16.mxu0 0
  %1255 = vmatpush1.bf16.msra.mxu0 0
  %1256 = vmatprep.subr.bf16.mxu0 0
  %1257 = vmatpush1.bf16.msra.mxu0 0
  %1258 = vmatprep.mubr.bf16.mxu0 0
  %1259 = vmatmul.mubr.bf16.gmra.mrb[0].mxu0 %v1215
  %v1260 = vpop.f32.mrb[0].mxu0
  %v1261 = vadd.f32 0.0, %v1260
  %v1262 = vpop.f32.mrb[0].mxu0
  %v1263 = vpop.f32.mrb[0].mxu0
  %v1264 = vadd.f32 0.0, %v1263
  %v1265 = vpop.f32.mrb[0].mxu0
  %1266 = vmatprep.mubr.bf16.mxu0 0
  %1267 = vmatmul.mubr.bf16.gmra.mrb[0].mxu0 %v1218
  %v1268 = vpop.f32.mrb[0].mxu0
  %v1269 = vadd.f32 0.0, %v1268
  %v1270 = vpop.f32.mrb[0].mxu0
  %v1271 = vpop.f32.mrb[0].mxu0
  %v1272 = vadd.f32 0.0, %v1271
  %v1273 = vpop.f32.mrb[0].mxu0
  %1274 = vmatprep.mubr.bf16.mxu0 0
  %1275 = vmatmul.mubr.bf16.gmra.mrb[0].mxu0 %v1221
  %v1276 = vpop.f32.mrb[0].mxu0
  %v1277 = vadd.f32 0.0, %v1276
  %v1278 = vpop.f32.mrb[0].mxu0
  %v1279 = vpop.f32.mrb[0].mxu0
  %v1280 = vadd.f32 0.0, %v1279
  %v1281 = vpop.f32.mrb[0].mxu0
  %1282 = vmatprep.mubr.bf16.mxu0 0
  %1283 = vmatmul.mubr.bf16.gmra.mrb[0].mxu0 %v1224
  %v1284 = vpop.f32.mrb[0].mxu0
  %v1285 = vadd.f32 0.0, %v1284
  %v1286 = vpop.f32.mrb[0].mxu0
  %v1287 = vpop.f32.mrb[0].mxu0
  %v1288 = vadd.f32 0.0, %v1287
  %v1289 = vpop.f32.mrb[0].mxu0
  %1290 = vdwg.mxu0
  %v1291 = vsel %vm307, %v1261, -inf
  %v1292 = vsel %vm307, %v1264, -inf
  %v1293 = vsel %vm307, %v1269, -inf
  %v1294 = vsel %vm307, %v1272, -inf
  %v1295 = vsel %vm307, %v1277, -inf
  %v1296 = vmax.f32 %v1291, %v1295
  %v1297 = vsel %vm307, %v1280, -inf
  %v1298 = vmax.f32 %v1292, %v1297
  %v1299 = vsel %vm307, %v1285, -inf
  %v1300 = vmax.f32 %v1293, %v1299
  %v1301 = vsel %vm307, %v1288, -inf
  %v1302 = vmax.f32 %v1294, %v1301
  %v1303 = vmax.f32 %v1296, %v1298
  %v1304 = vmax.f32 %v1300, %v1302
  %v1305 = vmax.f32 %v1303, %v1304
  %v1306 = vrot.slane %v1305, 4
  %v1307 = vmax.f32 %v1305, %v1306
  %v1308 = vrot.slane %v1307, 2
  %v1309 = vmax.f32 %v1307, %v1308
  %v1310 = vrot.slane %v1309, 1
  %v1311 = vmax.f32 %v1309, %v1310
  %v1312 = vsub.f32 %v1261, %v1311
  %v1313 = vsub.f32 %v1264, %v1311
  %v1314 = vsub.f32 %v1269, %v1311
  %v1315 = vsub.f32 %v1272, %v1311
  %v1316 = vsub.f32 %v1277, %v1311
  %v1317 = vsub.f32 %v1280, %v1311
  %v1318 = vsub.f32 %v1285, %v1311
  %v1319 = vsub.f32 %v1288, %v1311
  %v1320 = vmul.f32 %v1312, 1.442695
  %v1321 = vpow.pop %v1320
  %v1322 = vmul.f32 %v1313, 1.442695
  %v1323 = vpow.pop %v1322
  %v1324 = vmul.f32 %v1314, 1.442695
  %v1325 = vpow.pop %v1324
  %v1326 = vmul.f32 %v1315, 1.442695
  %v1327 = vpow.pop %v1326
  %v1328 = vmul.f32 %v1316, 1.442695
  %v1329 = vpow.pop %v1328
  %v1330 = vmul.f32 %v1317, 1.442695
  %v1331 = vpow.pop %v1330
  %v1332 = vmul.f32 %v1318, 1.442695
  %v1333 = vpow.pop %v1332
  %v1334 = vmul.f32 %v1319, 1.442695
  %v1335 = vpow.pop %v1334
  %v1336 = vpack.c.bf16 %v1323, %v1321
  %v1337 = vpack.c.bf16 %v1327, %v1325
  %v1338 = vpack.c.bf16 %v1331, %v1329
  %v1339 = vpack.c.bf16 %v1335, %v1333
  %1342 = vrot.lane.b32.xlu0 %v957, 64
  %v1343 = vpop.permute.xlu0 %1342
  %1344 = vrot.lane.b32.xlu0 %v958, 64
  %v1345 = vpop.permute.xlu0 %1344
  %v1347 = vsel %vm307, %v1343, 0
  %v1350 = vsel %vm307, %v1345, 0
  %1352 = vmatprep.subr.bf16.mxu0 0
  %1353 = vmatpush1.bf16.msra.mxu0 %v1336
  %1354 = vmatprep.subr.bf16.mxu0 0
  %1355 = vmatpush1.bf16.msra.mxu0 %v1337
  %1356 = vmatprep.subr.bf16.mxu0 0
  %1357 = vmatpush1.bf16.msra.mxu0 %v1338
  %1358 = vmatprep.subr.bf16.mxu0 0
  %1359 = vmatpush1.bf16.msra.mxu0 %v1339
  %1360 = vmatprep.subr.bf16.mxu0 0
  %1361 = vmatpush1.bf16.msra.mxu0 0
  %1362 = vmatprep.subr.bf16.mxu0 0
  %1363 = vmatpush1.bf16.msra.mxu0 0
  %1364 = vmatprep.subr.bf16.mxu0 0
  %1365 = vmatpush1.bf16.msra.mxu0 0
  %1366 = vmatprep.subr.bf16.mxu0 0
  %1367 = vmatpush1.bf16.msra.mxu0 0
  %1368 = vmatprep.subr.bf16.mxu0 0
  %1369 = vmatpush1.bf16.msra.mxu0 0
  %1370 = vmatprep.subr.bf16.mxu0 0
  %1371 = vmatpush1.bf16.msra.mxu0 0
  %1372 = vmatprep.subr.bf16.mxu0 0
  %1373 = vmatpush1.bf16.msra.mxu0 0
  %1374 = vmatprep.subr.bf16.mxu0 0
  %1375 = vmatpush1.bf16.msra.mxu0 0
  %1376 = vmatprep.subr.bf16.mxu0 0
  %1377 = vmatpush1.bf16.msra.mxu0 0
  %1378 = vmatprep.subr.bf16.mxu0 0
  %1379 = vmatpush1.bf16.msra.mxu0 0
  %1380 = vmatprep.subr.bf16.mxu0 0
  %1381 = vmatpush1.bf16.msra.mxu0 0
  %1382 = vmatprep.subr.bf16.mxu0 0
  %1383 = vmatpush1.bf16.msra.mxu0 0
  %1384 = vmatprep.mubr.bf16.mxu0 0
  %1385 = vmatmul.mubr.bf16.gmra.mrb[0].mxu0 %v1347
  %v1386 = vpop.f32.mrb[0].mxu0
  %v1387 = vadd.f32 0.0, %v1386
  %v1388 = vpop.f32.mrb[0].mxu0
  %v1389 = vpop.f32.mrb[0].mxu0
  %v1390 = vadd.f32 0.0, %v1389
  %v1391 = vpop.f32.mrb[0].mxu0
  %1392 = vmatprep.mubr.bf16.mxu0 0
  %1393 = vmatmul.mubr.bf16.gmra.mrb[0].mxu0 %v1350
  %v1394 = vpop.f32.mrb[0].mxu0
  %v1395 = vadd.f32 0.0, %v1394
  %v1396 = vpop.f32.mrb[0].mxu0
  %v1397 = vpop.f32.mrb[0].mxu0
  %v1398 = vadd.f32 0.0, %v1397
  %v1399 = vpop.f32.mrb[0].mxu0
  %1400 = vdwg.mxu0
  %v1401 = vsel %vm307, %v1321, 0.0
  %v1402 = vsel %vm307, %v1323, 0.0
  %v1403 = vadd.f32 %v1401, %v1402
  %v1404 = vsel %vm307, %v1325, 0.0
  %v1405 = vadd.f32 %v1403, %v1404
  %v1406 = vsel %vm307, %v1327, 0.0
  %v1407 = vadd.f32 %v1405, %v1406
  %v1408 = vsel %vm307, %v1329, 0.0
  %v1409 = vadd.f32 %v1407, %v1408
  %v1410 = vsel %vm307, %v1331, 0.0
  %v1411 = vadd.f32 %v1409, %v1410
  %v1412 = vsel %vm307, %v1333, 0.0
  %v1413 = vadd.f32 %v1411, %v1412
  %v1414 = vsel %vm307, %v1335, 0.0
  %v1415 = vadd.f32 %v1413, %v1414
  %v1416 = vrot.slane %v1415, 4
  %v1417 = vadd.f32 %v1415, %v1416
  %v1418 = vrot.slane %v1417, 2
  %v1419 = vadd.f32 %v1417, %v1418
  %v1420 = vrot.slane %v1419, 1
  %v1421 = vadd.f32 %v1419, %v1420
  %v1422 = vrcp.pop %v1421
  %v1423 = vmul.f32 %v1387, %v1422
  %v1424 = vmul.f32 %v1390, %v1422
  %v1425 = vmul.f32 %v1395, %v1422
  %v1426 = vmul.f32 %v1398, %v1422
  %1431 = vrot.lane.b32.xlu0 %v1423, 64
  %v1432 = vpop.permute.xlu0 %1431
  %1433 = vrot.lane.b32.xlu0 %v1424, 64
  %v1434 = vpop.permute.xlu0 %1433
  %1435 = vrot.lane.b32.xlu0 %v1425, 64
  %v1436 = vpop.permute.xlu0 %1435
  %1437 = vrot.lane.b32.xlu0 %v1426, 64
  %v1438 = vpop.permute.xlu0 %1437
  %v1443 = vsel %vm307, %v1178, %v1432
  %v1444 = vsel %vm307, %v1179, %v1434
  %v1445 = vsel %vm307, %v1180, %v1436
  %v1446 = vsel %vm307, %v1181, %v1438
  %v1447 = vld [vmem:[%s6] sm:$0xff]
  %v1448 = vld [vmem:[%s6 + $0x8] sm:$0xff]
  %v1449 = vld [vmem:[%s6 + $0x10] sm:$0xff]
  %v1450 = vld [vmem:[%s6 + $0x18] sm:$0xff]
  %v1451 = vld [vmem:[%s7] sm:$0xff]
  %v1452 = vld [vmem:[%s7 + $0x8] sm:$0xff]
  %v1453 = vld [vmem:[%s7 + $0x10] sm:$0xff]
  %v1454 = vld [vmem:[%s7 + $0x18] sm:$0xff]
  %v1455 = vadd.f32 %v1443, %v1444
  %v1456 = vadd.f32 %v1455, %v1445
  %v1457 = vadd.f32 %v1456, %v1446
  %v1458 = vrot.slane %v1457, 4
  %v1459 = vadd.f32 %v1457, %v1458
  %v1460 = vrot.slane %v1459, 2
  %v1461 = vadd.f32 %v1459, %v1460
  %v1462 = vrot.slane %v1461, 1
  %v1463 = vadd.f32 %v1461, %v1462
  %v1464 = vmul.f32 %v1463, %v720
  %v1465 = vsub.f32 %v1443, %v1464
  %v1466 = vsub.f32 %v1444, %v1464
  %v1467 = vsub.f32 %v1445, %v1464
  %v1468 = vsub.f32 %v1446, %v1464
  %v1469 = vmul.f32 %v1465, %v1465
  %v1470 = vmul.f32 %v1466, %v1466
  %v1471 = vmul.f32 %v1467, %v1467
  %v1472 = vmul.f32 %v1468, %v1468
  %v1473 = vadd.f32 %v1469, %v1470
  %v1474 = vadd.f32 %v1473, %v1471
  %v1475 = vadd.f32 %v1474, %v1472
  %v1476 = vrot.slane %v1475, 4
  %v1477 = vadd.f32 %v1475, %v1476
  %v1478 = vrot.slane %v1477, 2
  %v1479 = vadd.f32 %v1477, %v1478
  %v1480 = vrot.slane %v1479, 1
  %v1481 = vadd.f32 %v1479, %v1480
  %v1482 = vmul.f32 %v1481, %v720
  %v1483 = vadd.f32 %v1482, 1e-05
  %v1484 = vrsqrt.pop %v1483
  %v1485 = vmul.f32 %v1465, %v1484
  %v1486 = vmul.f32 %v1466, %v1484
  %v1487 = vmul.f32 %v1467, %v1484
  %v1488 = vmul.f32 %v1468, %v1484
  %1490 = vset.pattern.permute.xlu0 0
  %1491 = vperm.xlu0 %1490, %v1447
  %v1492 = vpop.permute.xlu0 %1491
  %1495 = vset.pattern.permute.xlu0 0
  %1496 = vperm.xlu0 %1495, %v1448
  %v1497 = vpop.permute.xlu0 %1496
  %1500 = vset.pattern.permute.xlu0 0
  %1501 = vperm.xlu0 %1500, %v1449
  %v1502 = vpop.permute.xlu0 %1501
  %1505 = vset.pattern.permute.xlu0 0
  %1506 = vperm.xlu0 %1505, %v1450
  %v1507 = vpop.permute.xlu0 %1506
  %v1509 = vmul.f32 %v1485, %v1492
  %v1510 = vmul.f32 %v1486, %v1497
  %v1511 = vmul.f32 %v1487, %v1502
  %v1512 = vmul.f32 %v1488, %v1507
  %1514 = vset.pattern.permute.xlu0 0
  %1515 = vperm.xlu0 %1514, %v1451
  %v1516 = vpop.permute.xlu0 %1515
  %1519 = vset.pattern.permute.xlu0 0
  %1520 = vperm.xlu0 %1519, %v1452
  %v1521 = vpop.permute.xlu0 %1520
  %1524 = vset.pattern.permute.xlu0 0
  %1525 = vperm.xlu0 %1524, %v1453
  %v1526 = vpop.permute.xlu0 %1525
  %1529 = vset.pattern.permute.xlu0 0
  %1530 = vperm.xlu0 %1529, %v1454
  %v1531 = vpop.permute.xlu0 %1530
  %v1533 = vadd.f32 %v1509, %v1516
  %v1534 = vadd.f32 %v1510, %v1521
  %v1535 = vadd.f32 %v1511, %v1526
  %v1536 = vadd.f32 %v1512, %v1531
  %v1537 = vpack.c.bf16 %v1534, %v1533
  %v1538 = vpack.c.bf16 %v1536, %v1535
  %v1539 = vld [vmem:[%s8] sm:$0xf]
  %v1540 = vld [vmem:[%s8 + $0x4] sm:$0xf]
  %v1541 = vld [vmem:[%s8 + $0x8] sm:$0xf]
  %v1542 = vld [vmem:[%s8 + $0xc] sm:$0xf]
  %v1543 = vld [vmem:[%s8 + $0x10] sm:$0xf]
  %v1544 = vld [vmem:[%s8 + $0x14] sm:$0xf]
  %v1545 = vld [vmem:[%s8 + $0x18] sm:$0xf]
  %v1546 = vld [vmem:[%s8 + $0x1c] sm:$0xf]
  %v1547 = vld [vmem:[%s8 + $0x20] sm:$0xf]
  %v1548 = vld [vmem:[%s8 + $0x24] sm:$0xf]
  %v1549 = vld [vmem:[%s8 + $0x28] sm:$0xf]
  %v1550 = vld [vmem:[%s8 + $0x2c] sm:$0xf]
  %v1551 = vld [vmem:[%s8 + $0x30] sm:$0xf]
  %v1552 = vld [vmem:[%s8 + $0x34] sm:$0xf]
  %v1553 = vld [vmem:[%s8 + $0x38] sm:$0xf]
  %v1554 = vld [vmem:[%s8 + $0x3c] sm:$0xf]
  %v1555 = vld [vmem:[%s8 + $0x40] sm:$0xf]
  %v1556 = vld [vmem:[%s8 + $0x44] sm:$0xf]
  %v1557 = vld [vmem:[%s8 + $0x48] sm:$0xf]
  %v1558 = vld [vmem:[%s8 + $0x4c] sm:$0xf]
  %v1559 = vld [vmem:[%s8 + $0x50] sm:$0xf]
  %v1560 = vld [vmem:[%s8 + $0x54] sm:$0xf]
  %v1561 = vld [vmem:[%s8 + $0x58] sm:$0xf]
  %v1562 = vld [vmem:[%s8 + $0x5c] sm:$0xf]
  %v1563 = vld [vmem:[%s8 + $0x60] sm:$0xf]
  %v1564 = vld [vmem:[%s8 + $0x64] sm:$0xf]
  %v1565 = vld [vmem:[%s8 + $0x68] sm:$0xf]
  %v1566 = vld [vmem:[%s8 + $0x6c] sm:$0xf]
  %v1567 = vld [vmem:[%s8 + $0x70] sm:$0xf]
  %v1568 = vld [vmem:[%s8 + $0x74] sm:$0xf]
  %v1569 = vld [vmem:[%s8 + $0x78] sm:$0xf]
  %v1570 = vld [vmem:[%s8 + $0x7c] sm:$0xf]
  %v1603 = vunpack.c.l.b16 %v1539
  %v1604 = vunpack.c.l.b16 %v1540
  %v1605 = vunpack.c.l.b16 %v1541
  %v1606 = vunpack.c.l.b16 %v1542
  %v1607 = vunpack.c.l.b16 %v1543
  %v1608 = vunpack.c.l.b16 %v1544
  %v1609 = vunpack.c.l.b16 %v1545
  %v1610 = vunpack.c.l.b16 %v1546
  %v1611 = vunpack.c.l.b16 %v1547
  %v1612 = vunpack.c.l.b16 %v1548
  %v1613 = vunpack.c.l.b16 %v1549
  %v1614 = vunpack.c.l.b16 %v1550
  %v1615 = vunpack.c.l.b16 %v1551
  %v1616 = vunpack.c.l.b16 %v1552
  %v1617 = vunpack.c.l.b16 %v1553
  %v1618 = vunpack.c.l.b16 %v1554
  %v1619 = vunpack.c.l.b16 %v1555
  %v1620 = vunpack.c.l.b16 %v1556
  %v1621 = vunpack.c.l.b16 %v1557
  %v1622 = vunpack.c.l.b16 %v1558
  %v1623 = vunpack.c.l.b16 %v1559
  %v1624 = vunpack.c.l.b16 %v1560
  %v1625 = vunpack.c.l.b16 %v1561
  %v1626 = vunpack.c.l.b16 %v1562
  %v1627 = vunpack.c.l.b16 %v1563
  %v1628 = vunpack.c.l.b16 %v1564
  %v1629 = vunpack.c.l.b16 %v1565
  %v1630 = vunpack.c.l.b16 %v1566
  %v1631 = vunpack.c.l.b16 %v1567
  %v1632 = vunpack.c.l.b16 %v1568
  %v1633 = vunpack.c.l.b16 %v1569
  %v1634 = vunpack.c.l.b16 %v1570
  %v1635 = vpack.c.b16 %v1604, %v1603
  %v1636 = vpack.c.b16 %v1606, %v1605
  %v1637 = vpack.c.b16 %v1608, %v1607
  %v1638 = vpack.c.b16 %v1610, %v1609
  %v1639 = vpack.c.b16 %v1612, %v1611
  %v1640 = vpack.c.b16 %v1614, %v1613
  %v1641 = vpack.c.b16 %v1616, %v1615
  %v1642 = vpack.c.b16 %v1618, %v1617
  %v1643 = vpack.c.b16 %v1620, %v1619
  %v1644 = vpack.c.b16 %v1622, %v1621
  %v1645 = vpack.c.b16 %v1624, %v1623
  %v1646 = vpack.c.b16 %v1626, %v1625
  %v1647 = vpack.c.b16 %v1628, %v1627
  %v1648 = vpack.c.b16 %v1630, %v1629
  %v1649 = vpack.c.b16 %v1632, %v1631
  %v1650 = vpack.c.b16 %v1634, %v1633
  %v1652 = vsel %vm307, %v1635, 0
  %v1655 = vsel %vm307, %v1636, 0
  %v1658 = vsel %vm307, %v1637, 0
  %v1661 = vsel %vm307, %v1638, 0
  %v1664 = vsel %vm307, %v1639, 0
  %v1667 = vsel %vm307, %v1640, 0
  %v1670 = vsel %vm307, %v1641, 0
  %v1673 = vsel %vm307, %v1642, 0
  %v1676 = vsel %vm307, %v1643, 0
  %v1679 = vsel %vm307, %v1644, 0
  %v1682 = vsel %vm307, %v1645, 0
  %v1685 = vsel %vm307, %v1646, 0
  %v1688 = vsel %vm307, %v1647, 0
  %v1691 = vsel %vm307, %v1648, 0
  %v1694 = vsel %vm307, %v1649, 0
  %v1697 = vsel %vm307, %v1650, 0
  %1699 = vmatprep.subr.bf16.mxu0 0
  %1700 = vmatpush1.bf16.msra.mxu0 %v798
  %1701 = vmatprep.subr.bf16.mxu0 0
  %1702 = vmatpush1.bf16.msra.mxu0 %v799
  %1703 = vmatprep.subr.bf16.mxu0 0
  %1704 = vmatpush1.bf16.msra.mxu0 %v1537
  %1705 = vmatprep.subr.bf16.mxu0 0
  %1706 = vmatpush1.bf16.msra.mxu0 %v1538
  %1707 = vmatprep.subr.bf16.mxu0 0
  %1708 = vmatpush1.bf16.msra.mxu0 0
  %1709 = vmatprep.subr.bf16.mxu0 0
  %1710 = vmatpush1.bf16.msra.mxu0 0
  %1711 = vmatprep.subr.bf16.mxu0 0
  %1712 = vmatpush1.bf16.msra.mxu0 0
  %1713 = vmatprep.subr.bf16.mxu0 0
  %1714 = vmatpush1.bf16.msra.mxu0 0
  %1715 = vmatprep.subr.bf16.mxu0 0
  %1716 = vmatpush1.bf16.msra.mxu0 0
  %1717 = vmatprep.subr.bf16.mxu0 0
  %1718 = vmatpush1.bf16.msra.mxu0 0
  %1719 = vmatprep.subr.bf16.mxu0 0
  %1720 = vmatpush1.bf16.msra.mxu0 0
  %1721 = vmatprep.subr.bf16.mxu0 0
  %1722 = vmatpush1.bf16.msra.mxu0 0
  %1723 = vmatprep.subr.bf16.mxu0 0
  %1724 = vmatpush1.bf16.msra.mxu0 0
  %1725 = vmatprep.subr.bf16.mxu0 0
  %1726 = vmatpush1.bf16.msra.mxu0 0
  %1727 = vmatprep.subr.bf16.mxu0 0
  %1728 = vmatpush1.bf16.msra.mxu0 0
  %1729 = vmatprep.subr.bf16.mxu0 0
  %1730 = vmatpush1.bf16.msra.mxu0 0
  %1731 = vmatprep.mubr.bf16.mxu0 0
  %1732 = vmatmul.mubr.bf16.gmra.mrb[0].mxu0 %v1652
  %v1733 = vpop.f32.mrb[0].mxu0
  %v1734 = vadd.f32 0.0, %v1733
  %v1735 = vpop.f32.mrb[0].mxu0
  %v1736 = vpop.f32.mrb[0].mxu0
  %v1737 = vadd.f32 0.0, %v1736
  %v1738 = vpop.f32.mrb[0].mxu0
  %1739 = vmatprep.mubr.bf16.mxu0 0
  %1740 = vmatmul.mubr.bf16.gmra.mrb[0].mxu0 %v1655
  %v1741 = vpop.f32.mrb[0].mxu0
  %v1742 = vadd.f32 0.0, %v1741
  %v1743 = vpop.f32.mrb[0].mxu0
  %v1744 = vpop.f32.mrb[0].mxu0
  %v1745 = vadd.f32 0.0, %v1744
  %v1746 = vpop.f32.mrb[0].mxu0
  %1747 = vmatprep.mubr.bf16.mxu0 0
  %1748 = vmatmul.mubr.bf16.gmra.mrb[0].mxu0 %v1658
  %v1749 = vpop.f32.mrb[0].mxu0
  %v1750 = vadd.f32 0.0, %v1749
  %v1751 = vpop.f32.mrb[0].mxu0
  %v1752 = vpop.f32.mrb[0].mxu0
  %v1753 = vadd.f32 0.0, %v1752
  %v1754 = vpop.f32.mrb[0].mxu0
  %1755 = vmatprep.mubr.bf16.mxu0 0
  %1756 = vmatmul.mubr.bf16.gmra.mrb[0].mxu0 %v1661
  %v1757 = vpop.f32.mrb[0].mxu0
  %v1758 = vadd.f32 0.0, %v1757
  %v1759 = vpop.f32.mrb[0].mxu0
  %v1760 = vpop.f32.mrb[0].mxu0
  %v1761 = vadd.f32 0.0, %v1760
  %v1762 = vpop.f32.mrb[0].mxu0
  %1763 = vmatprep.mubr.bf16.mxu0 0
  %1764 = vmatmul.mubr.bf16.gmra.mrb[0].mxu0 %v1664
  %v1765 = vpop.f32.mrb[0].mxu0
  %v1766 = vadd.f32 0.0, %v1765
  %v1767 = vpop.f32.mrb[0].mxu0
  %v1768 = vpop.f32.mrb[0].mxu0
  %v1769 = vadd.f32 0.0, %v1768
  %v1770 = vpop.f32.mrb[0].mxu0
  %1771 = vmatprep.mubr.bf16.mxu0 0
  %1772 = vmatmul.mubr.bf16.gmra.mrb[0].mxu0 %v1667
  %v1773 = vpop.f32.mrb[0].mxu0
  %v1774 = vadd.f32 0.0, %v1773
  %v1775 = vpop.f32.mrb[0].mxu0
  %v1776 = vpop.f32.mrb[0].mxu0
  %v1777 = vadd.f32 0.0, %v1776
  %v1778 = vpop.f32.mrb[0].mxu0
  %1779 = vmatprep.mubr.bf16.mxu0 0
  %1780 = vmatmul.mubr.bf16.gmra.mrb[0].mxu0 %v1670
  %v1781 = vpop.f32.mrb[0].mxu0
  %v1782 = vadd.f32 0.0, %v1781
  %v1783 = vpop.f32.mrb[0].mxu0
  %v1784 = vpop.f32.mrb[0].mxu0
  %v1785 = vadd.f32 0.0, %v1784
  %v1786 = vpop.f32.mrb[0].mxu0
  %1787 = vmatprep.mubr.bf16.mxu0 0
  %1788 = vmatmul.mubr.bf16.gmra.mrb[0].mxu0 %v1673
  %v1789 = vpop.f32.mrb[0].mxu0
  %v1790 = vadd.f32 0.0, %v1789
  %v1791 = vpop.f32.mrb[0].mxu0
  %v1792 = vpop.f32.mrb[0].mxu0
  %v1793 = vadd.f32 0.0, %v1792
  %v1794 = vpop.f32.mrb[0].mxu0
  %1795 = vmatprep.mubr.bf16.mxu0 0
  %1796 = vmatmul.mubr.bf16.gmra.mrb[0].mxu0 %v1676
  %v1797 = vpop.f32.mrb[0].mxu0
  %v1798 = vadd.f32 0.0, %v1797
  %v1799 = vpop.f32.mrb[0].mxu0
  %v1800 = vpop.f32.mrb[0].mxu0
  %v1801 = vadd.f32 0.0, %v1800
  %v1802 = vpop.f32.mrb[0].mxu0
  %1803 = vmatprep.mubr.bf16.mxu0 0
  %1804 = vmatmul.mubr.bf16.gmra.mrb[0].mxu0 %v1679
  %v1805 = vpop.f32.mrb[0].mxu0
  %v1806 = vadd.f32 0.0, %v1805
  %v1807 = vpop.f32.mrb[0].mxu0
  %v1808 = vpop.f32.mrb[0].mxu0
  %v1809 = vadd.f32 0.0, %v1808
  %v1810 = vpop.f32.mrb[0].mxu0
  %1811 = vmatprep.mubr.bf16.mxu0 0
  %1812 = vmatmul.mubr.bf16.gmra.mrb[0].mxu0 %v1682
  %v1813 = vpop.f32.mrb[0].mxu0
  %v1814 = vadd.f32 0.0, %v1813
  %v1815 = vpop.f32.mrb[0].mxu0
  %v1816 = vpop.f32.mrb[0].mxu0
  %v1817 = vadd.f32 0.0, %v1816
  %v1818 = vpop.f32.mrb[0].mxu0
  %1819 = vmatprep.mubr.bf16.mxu0 0
  %1820 = vmatmul.mubr.bf16.gmra.mrb[0].mxu0 %v1685
  %v1821 = vpop.f32.mrb[0].mxu0
  %v1822 = vadd.f32 0.0, %v1821
  %v1823 = vpop.f32.mrb[0].mxu0
  %v1824 = vpop.f32.mrb[0].mxu0
  %v1825 = vadd.f32 0.0, %v1824
  %v1826 = vpop.f32.mrb[0].mxu0
  %1827 = vmatprep.mubr.bf16.mxu0 0
  %1828 = vmatmul.mubr.bf16.gmra.mrb[0].mxu0 %v1688
  %v1829 = vpop.f32.mrb[0].mxu0
  %v1830 = vadd.f32 0.0, %v1829
  %v1831 = vpop.f32.mrb[0].mxu0
  %v1832 = vpop.f32.mrb[0].mxu0
  %v1833 = vadd.f32 0.0, %v1832
  %v1834 = vpop.f32.mrb[0].mxu0
  %1835 = vmatprep.mubr.bf16.mxu0 0
  %1836 = vmatmul.mubr.bf16.gmra.mrb[0].mxu0 %v1691
  %v1837 = vpop.f32.mrb[0].mxu0
  %v1838 = vadd.f32 0.0, %v1837
  %v1839 = vpop.f32.mrb[0].mxu0
  %v1840 = vpop.f32.mrb[0].mxu0
  %v1841 = vadd.f32 0.0, %v1840
  %v1842 = vpop.f32.mrb[0].mxu0
  %1843 = vmatprep.mubr.bf16.mxu0 0
  %1844 = vmatmul.mubr.bf16.gmra.mrb[0].mxu0 %v1694
  %v1845 = vpop.f32.mrb[0].mxu0
  %v1846 = vadd.f32 0.0, %v1845
  %v1847 = vpop.f32.mrb[0].mxu0
  %v1848 = vpop.f32.mrb[0].mxu0
  %v1849 = vadd.f32 0.0, %v1848
  %v1850 = vpop.f32.mrb[0].mxu0
  %1851 = vmatprep.mubr.bf16.mxu0 0
  %1852 = vmatmul.mubr.bf16.gmra.mrb[0].mxu0 %v1697
  %v1853 = vpop.f32.mrb[0].mxu0
  %v1854 = vadd.f32 0.0, %v1853
  %v1855 = vpop.f32.mrb[0].mxu0
  %v1856 = vpop.f32.mrb[0].mxu0
  %v1857 = vadd.f32 0.0, %v1856
  %v1858 = vpop.f32.mrb[0].mxu0
  %1859 = vdwg.mxu0
  %v1860 = vmul.f32 %v1734, 0.5
  %v1861 = vmul.f32 %v1737, 0.5
  %v1862 = vmul.f32 %v1742, 0.5
  %v1863 = vmul.f32 %v1745, 0.5
  %v1864 = vmul.f32 %v1750, 0.5
  %v1865 = vmul.f32 %v1753, 0.5
  %v1866 = vmul.f32 %v1758, 0.5
  %v1867 = vmul.f32 %v1761, 0.5
  %v1868 = vmul.f32 %v1766, 0.5
  %v1869 = vmul.f32 %v1769, 0.5
  %v1870 = vmul.f32 %v1774, 0.5
  %v1871 = vmul.f32 %v1777, 0.5
  %v1872 = vmul.f32 %v1782, 0.5
  %v1873 = vmul.f32 %v1785, 0.5
  %v1874 = vmul.f32 %v1790, 0.5
  %v1875 = vmul.f32 %v1793, 0.5
  %v1876 = vmul.f32 %v1798, 0.5
  %v1877 = vmul.f32 %v1801, 0.5
  %v1878 = vmul.f32 %v1806, 0.5
  %v1879 = vmul.f32 %v1809, 0.5
  %v1880 = vmul.f32 %v1814, 0.5
  %v1881 = vmul.f32 %v1817, 0.5
  %v1882 = vmul.f32 %v1822, 0.5
  %v1883 = vmul.f32 %v1825, 0.5
  %v1884 = vmul.f32 %v1830, 0.5
  %v1885 = vmul.f32 %v1833, 0.5
  %v1886 = vmul.f32 %v1838, 0.5
  %v1887 = vmul.f32 %v1841, 0.5
  %v1888 = vmul.f32 %v1846, 0.5
  %v1889 = vmul.f32 %v1849, 0.5
  %v1890 = vmul.f32 %v1854, 0.5
  %v1891 = vmul.f32 %v1857, 0.5
  %v1892 = vmul.f32 %v1734, 0.044715
  %v1893 = vmul.f32 %v1737, 0.044715
  %v1894 = vmul.f32 %v1742, 0.044715
  %v1895 = vmul.f32 %v1745, 0.044715
  %v1896 = vmul.f32 %v1750, 0.044715
  %v1897 = vmul.f32 %v1753, 0.044715
  %v1898 = vmul.f32 %v1758, 0.044715
  %v1899 = vmul.f32 %v1761, 0.044715
  %v1900 = vmul.f32 %v1766, 0.044715
  %v1901 = vmul.f32 %v1769, 0.044715
  %v1902 = vmul.f32 %v1774, 0.044715
  %v1903 = vmul.f32 %v1777, 0.044715
  %v1904 = vmul.f32 %v1782, 0.044715
  %v1905 = vmul.f32 %v1785, 0.044715
  %v1906 = vmul.f32 %v1790, 0.044715
  %v1907 = vmul.f32 %v1793, 0.044715
  %v1908 = vmul.f32 %v1798, 0.044715
  %v1909 = vmul.f32 %v1801, 0.044715
  %v1910 = vmul.f32 %v1806, 0.044715
  %v1911 = vmul.f32 %v1809, 0.044715
  %v1912 = vmul.f32 %v1814, 0.044715
  %v1913 = vmul.f32 %v1817, 0.044715
  %v1914 = vmul.f32 %v1822, 0.044715
  %v1915 = vmul.f32 %v1825, 0.044715
  %v1916 = vmul.f32 %v1830, 0.044715
  %v1917 = vmul.f32 %v1833, 0.044715
  %v1918 = vmul.f32 %v1838, 0.044715
  %v1919 = vmul.f32 %v1841, 0.044715
  %v1920 = vmul.f32 %v1846, 0.044715
  %v1921 = vmul.f32 %v1849, 0.044715
  %v1922 = vmul.f32 %v1854, 0.044715
  %v1923 = vmul.f32 %v1857, 0.044715
  %v1924 = vmul.f32 %v1892, %v1734
  %v1925 = vmul.f32 %v1893, %v1737
  %v1926 = vmul.f32 %v1894, %v1742
  %v1927 = vmul.f32 %v1895, %v1745
  %v1928 = vmul.f32 %v1896, %v1750
  %v1929 = vmul.f32 %v1897, %v1753
  %v1930 = vmul.f32 %v1898, %v1758
  %v1931 = vmul.f32 %v1899, %v1761
  %v1932 = vmul.f32 %v1900, %v1766
  %v1933 = vmul.f32 %v1901, %v1769
  %v1934 = vmul.f32 %v1902, %v1774
  %v1935 = vmul.f32 %v1903, %v1777
  %v1936 = vmul.f32 %v1904, %v1782
  %v1937 = vmul.f32 %v1905, %v1785
  %v1938 = vmul.f32 %v1906, %v1790
  %v1939 = vmul.f32 %v1907, %v1793
  %v1940 = vmul.f32 %v1908, %v1798
  %v1941 = vmul.f32 %v1909, %v1801
  %v1942 = vmul.f32 %v1910, %v1806
  %v1943 = vmul.f32 %v1911, %v1809
  %v1944 = vmul.f32 %v1912, %v1814
  %v1945 = vmul.f32 %v1913, %v1817
  %v1946 = vmul.f32 %v1914, %v1822
  %v1947 = vmul.f32 %v1915, %v1825
  %v1948 = vmul.f32 %v1916, %v1830
  %v1949 = vmul.f32 %v1917, %v1833
  %v1950 = vmul.f32 %v1918, %v1838
  %v1951 = vmul.f32 %v1919, %v1841
  %v1952 = vmul.f32 %v1920, %v1846
  %v1953 = vmul.f32 %v1921, %v1849
  %v1954 = vmul.f32 %v1922, %v1854
  %v1955 = vmul.f32 %v1923, %v1857
  %v1956 = vmul.f32 %v1924, %v1734
  %v1957 = vmul.f32 %v1925, %v1737
  %v1958 = vmul.f32 %v1926, %v1742
  %v1959 = vmul.f32 %v1927, %v1745
  %v1960 = vmul.f32 %v1928, %v1750
  %v1961 = vmul.f32 %v1929, %v1753
  %v1962 = vmul.f32 %v1930, %v1758
  %v1963 = vmul.f32 %v1931, %v1761
  %v1964 = vmul.f32 %v1932, %v1766
  %v1965 = vmul.f32 %v1933, %v1769
  %v1966 = vmul.f32 %v1934, %v1774
  %v1967 = vmul.f32 %v1935, %v1777
  %v1968 = vmul.f32 %v1936, %v1782
  %v1969 = vmul.f32 %v1937, %v1785
  %v1970 = vmul.f32 %v1938, %v1790
  %v1971 = vmul.f32 %v1939, %v1793
  %v1972 = vmul.f32 %v1940, %v1798
  %v1973 = vmul.f32 %v1941, %v1801
  %v1974 = vmul.f32 %v1942, %v1806
  %v1975 = vmul.f32 %v1943, %v1809
  %v1976 = vmul.f32 %v1944, %v1814
  %v1977 = vmul.f32 %v1945, %v1817
  %v1978 = vmul.f32 %v1946, %v1822
  %v1979 = vmul.f32 %v1947, %v1825
  %v1980 = vmul.f32 %v1948, %v1830
  %v1981 = vmul.f32 %v1949, %v1833
  %v1982 = vmul.f32 %v1950, %v1838
  %v1983 = vmul.f32 %v1951, %v1841
  %v1984 = vmul.f32 %v1952, %v1846
  %v1985 = vmul.f32 %v1953, %v1849
  %v1986 = vmul.f32 %v1954, %v1854
  %v1987 = vmul.f32 %v1955, %v1857
  %v1988 = vadd.f32 %v1734, %v1956
  %v1989 = vadd.f32 %v1737, %v1957
  %v1990 = vadd.f32 %v1742, %v1958
  %v1991 = vadd.f32 %v1745, %v1959
  %v1992 = vadd.f32 %v1750, %v1960
  %v1993 = vadd.f32 %v1753, %v1961
  %v1994 = vadd.f32 %v1758, %v1962
  %v1995 = vadd.f32 %v1761, %v1963
  %v1996 = vadd.f32 %v1766, %v1964
  %v1997 = vadd.f32 %v1769, %v1965
  %v1998 = vadd.f32 %v1774, %v1966
  %v1999 = vadd.f32 %v1777, %v1967
  %v2000 = vadd.f32 %v1782, %v1968
  %v2001 = vadd.f32 %v1785, %v1969
  %v2002 = vadd.f32 %v1790, %v1970
  %v2003 = vadd.f32 %v1793, %v1971
  %v2004 = vadd.f32 %v1798, %v1972
  %v2005 = vadd.f32 %v1801, %v1973
  %v2006 = vadd.f32 %v1806, %v1974
  %v2007 = vadd.f32 %v1809, %v1975
  %v2008 = vadd.f32 %v1814, %v1976
  %v2009 = vadd.f32 %v1817, %v1977
  %v2010 = vadd.f32 %v1822, %v1978
  %v2011 = vadd.f32 %v1825, %v1979
  %v2012 = vadd.f32 %v1830, %v1980
  %v2013 = vadd.f32 %v1833, %v1981
  %v2014 = vadd.f32 %v1838, %v1982
  %v2015 = vadd.f32 %v1841, %v1983
  %v2016 = vadd.f32 %v1846, %v1984
  %v2017 = vadd.f32 %v1849, %v1985
  %v2018 = vadd.f32 %v1854, %v1986
  %v2019 = vadd.f32 %v1857, %v1987
  %v2020 = vmul.f32 %v1988, 0.7978846
  %v2021 = vmul.f32 %v1989, 0.7978846
  %v2022 = vmul.f32 %v1990, 0.7978846
  %v2023 = vmul.f32 %v1991, 0.7978846
  %v2024 = vmul.f32 %v1992, 0.7978846
  %v2025 = vmul.f32 %v1993, 0.7978846
  %v2026 = vmul.f32 %v1994, 0.7978846
  %v2027 = vmul.f32 %v1995, 0.7978846
  %v2028 = vmul.f32 %v1996, 0.7978846
  %v2029 = vmul.f32 %v1997, 0.7978846
  %v2030 = vmul.f32 %v1998, 0.7978846
  %v2031 = vmul.f32 %v1999, 0.7978846
  %v2032 = vmul.f32 %v2000, 0.7978846
  %v2033 = vmul.f32 %v2001, 0.7978846
  %v2034 = vmul.f32 %v2002, 0.7978846
  %v2035 = vmul.f32 %v2003, 0.7978846
  %v2036 = vmul.f32 %v2004, 0.7978846
  %v2037 = vmul.f32 %v2005, 0.7978846
  %v2038 = vmul.f32 %v2006, 0.7978846
  %v2039 = vmul.f32 %v2007, 0.7978846
  %v2040 = vmul.f32 %v2008, 0.7978846
  %v2041 = vmul.f32 %v2009, 0.7978846
  %v2042 = vmul.f32 %v2010, 0.7978846
  %v2043 = vmul.f32 %v2011, 0.7978846
  %v2044 = vmul.f32 %v2012, 0.7978846
  %v2045 = vmul.f32 %v2013, 0.7978846
  %v2046 = vmul.f32 %v2014, 0.7978846
  %v2047 = vmul.f32 %v2015, 0.7978846
  %v2048 = vmul.f32 %v2016, 0.7978846
  %v2049 = vmul.f32 %v2017, 0.7978846
  %v2050 = vmul.f32 %v2018, 0.7978846
  %v2051 = vmul.f32 %v2019, 0.7978846
  %v2052 = vtanh.pop %v2020
  %v2053 = vtanh.pop %v2021
  %v2054 = vtanh.pop %v2022
  %v2055 = vtanh.pop %v2023
  %v2056 = vtanh.pop %v2024
  %v2057 = vtanh.pop %v2025
  %v2058 = vtanh.pop %v2026
  %v2059 = vtanh.pop %v2027
  %v2060 = vtanh.pop %v2028
  %v2061 = vtanh.pop %v2029
  %v2062 = vtanh.pop %v2030
  %v2063 = vtanh.pop %v2031
  %v2064 = vtanh.pop %v2032
  %v2065 = vtanh.pop %v2033
  %v2066 = vtanh.pop %v2034
  %v2067 = vtanh.pop %v2035
  %v2068 = vtanh.pop %v2036
  %v2069 = vtanh.pop %v2037
  %v2070 = vtanh.pop %v2038
  %v2071 = vtanh.pop %v2039
  %v2072 = vtanh.pop %v2040
  %v2073 = vtanh.pop %v2041
  %v2074 = vtanh.pop %v2042
  %v2075 = vtanh.pop %v2043
  %v2076 = vtanh.pop %v2044
  %v2077 = vtanh.pop %v2045
  %v2078 = vtanh.pop %v2046
  %v2079 = vtanh.pop %v2047
  %v2080 = vtanh.pop %v2048
  %v2081 = vtanh.pop %v2049
  %v2082 = vtanh.pop %v2050
  %v2083 = vtanh.pop %v2051
  %v2084 = vadd.f32 %v2052, 1.0
  %v2085 = vadd.f32 %v2053, 1.0
  %v2086 = vadd.f32 %v2054, 1.0
  %v2087 = vadd.f32 %v2055, 1.0
  %v2088 = vadd.f32 %v2056, 1.0
  %v2089 = vadd.f32 %v2057, 1.0
  %v2090 = vadd.f32 %v2058, 1.0
  %v2091 = vadd.f32 %v2059, 1.0
  %v2092 = vadd.f32 %v2060, 1.0
  %v2093 = vadd.f32 %v2061, 1.0
  %v2094 = vadd.f32 %v2062, 1.0
  %v2095 = vadd.f32 %v2063, 1.0
  %v2096 = vadd.f32 %v2064, 1.0
  %v2097 = vadd.f32 %v2065, 1.0
  %v2098 = vadd.f32 %v2066, 1.0
  %v2099 = vadd.f32 %v2067, 1.0
  %v2100 = vadd.f32 %v2068, 1.0
  %v2101 = vadd.f32 %v2069, 1.0
  %v2102 = vadd.f32 %v2070, 1.0
  %v2103 = vadd.f32 %v2071, 1.0
  %v2104 = vadd.f32 %v2072, 1.0
  %v2105 = vadd.f32 %v2073, 1.0
  %v2106 = vadd.f32 %v2074, 1.0
  %v2107 = vadd.f32 %v2075, 1.0
  %v2108 = vadd.f32 %v2076, 1.0
  %v2109 = vadd.f32 %v2077, 1.0
  %v2110 = vadd.f32 %v2078, 1.0
  %v2111 = vadd.f32 %v2079, 1.0
  %v2112 = vadd.f32 %v2080, 1.0
  %v2113 = vadd.f32 %v2081, 1.0
  %v2114 = vadd.f32 %v2082, 1.0
  %v2115 = vadd.f32 %v2083, 1.0
  %v2116 = vmul.f32 %v1860, %v2084
  %v2117 = vmul.f32 %v1861, %v2085
  %v2118 = vmul.f32 %v1862, %v2086
  %v2119 = vmul.f32 %v1863, %v2087
  %v2120 = vmul.f32 %v1864, %v2088
  %v2121 = vmul.f32 %v1865, %v2089
  %v2122 = vmul.f32 %v1866, %v2090
  %v2123 = vmul.f32 %v1867, %v2091
  %v2124 = vmul.f32 %v1868, %v2092
  %v2125 = vmul.f32 %v1869, %v2093
  %v2126 = vmul.f32 %v1870, %v2094
  %v2127 = vmul.f32 %v1871, %v2095
  %v2128 = vmul.f32 %v1872, %v2096
  %v2129 = vmul.f32 %v1873, %v2097
  %v2130 = vmul.f32 %v1874, %v2098
  %v2131 = vmul.f32 %v1875, %v2099
  %v2132 = vmul.f32 %v1876, %v2100
  %v2133 = vmul.f32 %v1877, %v2101
  %v2134 = vmul.f32 %v1878, %v2102
  %v2135 = vmul.f32 %v1879, %v2103
  %v2136 = vmul.f32 %v1880, %v2104
  %v2137 = vmul.f32 %v1881, %v2105
  %v2138 = vmul.f32 %v1882, %v2106
  %v2139 = vmul.f32 %v1883, %v2107
  %v2140 = vmul.f32 %v1884, %v2108
  %v2141 = vmul.f32 %v1885, %v2109
  %v2142 = vmul.f32 %v1886, %v2110
  %v2143 = vmul.f32 %v1887, %v2111
  %v2144 = vmul.f32 %v1888, %v2112
  %v2145 = vmul.f32 %v1889, %v2113
  %v2146 = vmul.f32 %v1890, %v2114
  %v2147 = vmul.f32 %v1891, %v2115
  %v2148 = vld [vmem:[%s9] sm:$0xff]
  %v2149 = vld [vmem:[%s9 + $0x8] sm:$0xff]
  %v2150 = vld [vmem:[%s9 + $0x10] sm:$0xff]
  %v2151 = vld [vmem:[%s9 + $0x18] sm:$0xff]
  %v2152 = vpack.c.bf16 %v2117, %v2116
  %v2153 = vpack.c.bf16 %v2119, %v2118
  %v2154 = vpack.c.bf16 %v2121, %v2120
  %v2155 = vpack.c.bf16 %v2123, %v2122
  %v2156 = vpack.c.bf16 %v2125, %v2124
  %v2157 = vpack.c.bf16 %v2127, %v2126
  %v2158 = vpack.c.bf16 %v2129, %v2128
  %v2159 = vpack.c.bf16 %v2131, %v2130
  %v2160 = vpack.c.bf16 %v2133, %v2132
  %v2161 = vpack.c.bf16 %v2135, %v2134
  %v2162 = vpack.c.bf16 %v2137, %v2136
  %v2163 = vpack.c.bf16 %v2139, %v2138
  %v2164 = vpack.c.bf16 %v2141, %v2140
  %v2165 = vpack.c.bf16 %v2143, %v2142
  %v2166 = vpack.c.bf16 %v2145, %v2144
  %v2167 = vpack.c.bf16 %v2147, %v2146
  %v2172 = vunpack.c.l.b16 %v2148
  %v2173 = vunpack.c.h.b16 %v2148
  %v2174 = vunpack.c.l.b16 %v2149
  %v2175 = vunpack.c.h.b16 %v2149
  %v2176 = vunpack.c.l.b16 %v2150
  %v2177 = vunpack.c.h.b16 %v2150
  %v2178 = vunpack.c.l.b16 %v2151
  %v2179 = vunpack.c.h.b16 %v2151
  %v2180 = vpack.c.b16 %v2174, %v2172
  %v2181 = vpack.c.b16 %v2175, %v2173
  %v2182 = vpack.c.b16 %v2178, %v2176
  %v2183 = vpack.c.b16 %v2179, %v2177
  %2188 = vmatprep.subr.bf16.mxu0 0
  %2189 = vmatpush1.bf16.msra.mxu0 %v2152
  %2190 = vmatprep.subr.bf16.mxu0 0
  %2191 = vmatpush1.bf16.msra.mxu0 %v2153
  %2192 = vmatprep.subr.bf16.mxu0 0
  %2193 = vmatpush1.bf16.msra.mxu0 %v2154
  %2194 = vmatprep.subr.bf16.mxu0 0
  %2195 = vmatpush1.bf16.msra.mxu0 %v2155
  %2196 = vmatprep.subr.bf16.mxu0 0
  %2197 = vmatpush1.bf16.msra.mxu0 %v2156
  %2198 = vmatprep.subr.bf16.mxu0 0
  %2199 = vmatpush1.bf16.msra.mxu0 %v2157
  %2200 = vmatprep.subr.bf16.mxu0 0
  %2201 = vmatpush1.bf16.msra.mxu0 %v2158
  %2202 = vmatprep.subr.bf16.mxu0 0
  %2203 = vmatpush1.bf16.msra.mxu0 %v2159
  %2204 = vmatprep.subr.bf16.mxu0 0
  %2205 = vmatpush1.bf16.msra.mxu0 %v2160
  %2206 = vmatprep.subr.bf16.mxu0 0
  %2207 = vmatpush1.bf16.msra.mxu0 %v2161
  %2208 = vmatprep.subr.bf16.mxu0 0
  %2209 = vmatpush1.bf16.msra.mxu0 %v2162
  %2210 = vmatprep.subr.bf16.mxu0 0
  %2211 = vmatpush1.bf16.msra.mxu0 %v2163
  %2212 = vmatprep.subr.bf16.mxu0 0
  %2213 = vmatpush1.bf16.msra.mxu0 %v2164
  %2214 = vmatprep.subr.bf16.mxu0 0
  %2215 = vmatpush1.bf16.msra.mxu0 %v2165
  %2216 = vmatprep.subr.bf16.mxu0 0
  %2217 = vmatpush1.bf16.msra.mxu0 %v2166
  %2218 = vmatprep.subr.bf16.mxu0 0
  %2219 = vmatpush1.bf16.msra.mxu0 %v2167
  %2220 = vmatprep.mubr.bf16.mxu0 %v2181
  %2221 = vmatmul.mubr.bf16.gmra.mrb[0].mxu0 %v2180
  %v2222 = vpop.f32.mrb[0].mxu0
  %v2223 = vadd.f32 0.0, %v2222
  %v2224 = vpop.f32.mrb[0].mxu0
  %v2225 = vpop.f32.mrb[0].mxu0
  %v2226 = vadd.f32 0.0, %v2225
  %v2227 = vpop.f32.mrb[0].mxu0
  %2228 = vmatprep.mubr.bf16.mxu0 %v2183
  %2229 = vmatmul.mubr.bf16.gmra.mrb[0].mxu0 %v2182
  %v2230 = vpop.f32.mrb[0].mxu0
  %v2231 = vadd.f32 0.0, %v2230
  %v2232 = vpop.f32.mrb[0].mxu0
  %v2233 = vpop.f32.mrb[0].mxu0
  %v2234 = vadd.f32 0.0, %v2233
  %v2235 = vpop.f32.mrb[0].mxu0
  %2236 = vdwg.mxu0
  %v2237 = vld [vmem:[%s10] sm:$0xff]
  %v2238 = vld [vmem:[%s10 + $0x8] sm:$0xff]
  %v2239 = vld [vmem:[%s10 + $0x10] sm:$0xff]
  %v2240 = vld [vmem:[%s10 + $0x18] sm:$0xff]
  %v2241 = vld [vmem:[%s11] sm:$0xff]
  %v2242 = vld [vmem:[%s11 + $0x8] sm:$0xff]
  %v2243 = vld [vmem:[%s11 + $0x10] sm:$0xff]
  %v2244 = vld [vmem:[%s11 + $0x18] sm:$0xff]
  %v2245 = vadd.f32 %v2223, %v2226
  %v2246 = vadd.f32 %v2245, %v2231
  %v2247 = vadd.f32 %v2246, %v2234
  %v2248 = vrot.slane %v2247, 4
  %v2249 = vadd.f32 %v2247, %v2248
  %v2250 = vrot.slane %v2249, 2
  %v2251 = vadd.f32 %v2249, %v2250
  %v2252 = vrot.slane %v2251, 1
  %v2253 = vadd.f32 %v2251, %v2252
  %v2254 = vmul.f32 %v2253, %v720
  %v2255 = vsub.f32 %v2223, %v2254
  %v2256 = vsub.f32 %v2226, %v2254
  %v2257 = vsub.f32 %v2231, %v2254
  %v2258 = vsub.f32 %v2234, %v2254
  %v2259 = vmul.f32 %v2255, %v2255
  %v2260 = vmul.f32 %v2256, %v2256
  %v2261 = vmul.f32 %v2257, %v2257
  %v2262 = vmul.f32 %v2258, %v2258
  %v2263 = vadd.f32 %v2259, %v2260
  %v2264 = vadd.f32 %v2263, %v2261
  %v2265 = vadd.f32 %v2264, %v2262
  %v2266 = vrot.slane %v2265, 4
  %v2267 = vadd.f32 %v2265, %v2266
  %v2268 = vrot.slane %v2267, 2
  %v2269 = vadd.f32 %v2267, %v2268
  %v2270 = vrot.slane %v2269, 1
  %v2271 = vadd.f32 %v2269, %v2270
  %v2272 = vmul.f32 %v2271, %v720
  %v2273 = vadd.f32 %v2272, 1e-05
  %v2274 = vrsqrt.pop %v2273
  %v2275 = vmul.f32 %v2255, %v2274
  %v2276 = vmul.f32 %v2256, %v2274
  %v2277 = vmul.f32 %v2257, %v2274
  %v2278 = vmul.f32 %v2258, %v2274
  %2280 = vset.pattern.permute.xlu0 0
  %2281 = vperm.xlu0 %2280, %v2237
  %v2282 = vpop.permute.xlu0 %2281
  %2285 = vset.pattern.permute.xlu0 0
  %2286 = vperm.xlu0 %2285, %v2238
  %v2287 = vpop.permute.xlu0 %2286
  %2290 = vset.pattern.permute.xlu0 0
  %2291 = vperm.xlu0 %2290, %v2239
  %v2292 = vpop.permute.xlu0 %2291
  %2295 = vset.pattern.permute.xlu0 0
  %2296 = vperm.xlu0 %2295, %v2240
  %v2297 = vpop.permute.xlu0 %2296
  %v2299 = vmul.f32 %v2275, %v2282
  %v2300 = vmul.f32 %v2276, %v2287
  %v2301 = vmul.f32 %v2277, %v2292
  %v2302 = vmul.f32 %v2278, %v2297
  %2304 = vset.pattern.permute.xlu0 0
  %2305 = vperm.xlu0 %2304, %v2241
  %v2306 = vpop.permute.xlu0 %2305
  %2309 = vset.pattern.permute.xlu0 0
  %2310 = vperm.xlu0 %2309, %v2242
  %v2311 = vpop.permute.xlu0 %2310
  %2314 = vset.pattern.permute.xlu0 0
  %2315 = vperm.xlu0 %2314, %v2243
  %v2316 = vpop.permute.xlu0 %2315
  %2319 = vset.pattern.permute.xlu0 0
  %2320 = vperm.xlu0 %2319, %v2244
  %v2321 = vpop.permute.xlu0 %2320
  %v2323 = vadd.f32 %v2299, %v2306
  %v2324 = vadd.f32 %v2300, %v2311
  %v2325 = vadd.f32 %v2301, %v2316
  %v2326 = vadd.f32 %v2302, %v2321
  %v2327 = vadd.f32 %v794, %v2323
  %v2328 = vadd.f32 %v795, %v2324
  %v2329 = vadd.f32 %v796, %v2325
  %v2330 = vadd.f32 %v797, %v2326
  %2331 = vst [vmem:[%s12] sm:$0xff] %v2327
  %2332 = vst [vmem:[%s12 + $0x8] sm:$0xff] %v2328
  %2333 = vst [vmem:[%s12 + $0x10] sm:$0xff] %v2329
  %2334 = vst [vmem:[%s12 + $0x18] sm:$0xff] %v2330
  // Predicated region
  $region50: #{feature_fuse_transformer.1} parent=0 // pred_check
    _
  $region51: #{feature_fuse_transformer.1} parent=0 // pred_check_branch
    %2336 = sbr.rel (0) target = $region53
  $region52: #{feature_fuse_transformer.1} parent=0 // pred_region
    _
  $region53: #{feature_fuse_transformer.1} parent=0 // pred_fallthru
    _
  // Predicated region
  $region54: #{feature_fuse_transformer.1} parent=0 // pred_check
    _
  $region55: #{feature_fuse_transformer.1} parent=0 // pred_check_branch
    %2338 = sbr.rel (0) target = $region57
  $region56: #{feature_fuse_transformer.1} parent=0 // pred_region
    _
  $region57: #{feature_fuse_transformer.1} parent=0 // pred_fallthru
    _

</llo_original>
